<compile_context>
chip_gen: v7x
topology: tpu7x:2x2x1
jax: 0.10.0
libtpu: 0.0.40
codegen_flags: <defaults>
</compile_context>

<pallas_src>
import functools

import jax
import jax.numpy as jnp
from jax import lax
from jax.experimental import pallas as pl
from jax.experimental.pallas import tpu as pltpu


def _round_up(x, m):
    return (x + m - 1) // m * m


_VMEM_LIMIT = 32 * 1024 * 1024  # safe on v5e/v6e/v7x; our tiles are far below this


# -----------------------------------------------------------------------------
# Kernel 1: fused  patches @ W + bias -> ReLU -> masked spatial mean
#           (one grid step handles a sublane-tile of nb images)
# -----------------------------------------------------------------------------
def _conv_pool_kernel(p_ref, w_ref, b_ref, m_ref, o_ref, acc_ref,
                      *, s_true, s_pad, nb):
    kt = pl.program_id(1)

    @pl.when(kt == 0)
    def _init():
        acc_ref[...] = jnp.zeros_like(acc_ref)

    # (nb*S_pad, tk) @ (tk, C_pad) on the MXU, f32 accumulate.
    acc_ref[...] += jnp.dot(p_ref[...], w_ref[...],
                            preferred_element_type=jnp.float32)

    @pl.when(kt == pl.num_programs(1) - 1)
    def _epilogue():
        y = jnp.maximum(acc_ref[...] + b_ref[...], 0.0)       # bias + ReLU, (nb*S_pad, C_pad)
        # Per-image masked mean over the true spatial rows as a block-diagonal
        # ones-matmul on the MXU.  Padded spatial rows (where relu(bias) != 0)
        # are excluded by the selection mask, so padding cannot leak in.
        col = lax.broadcasted_iota(jnp.int32, (nb, nb * s_pad), 1)
        row = lax.broadcasted_iota(jnp.int32, (nb, nb * s_pad), 0)
        sel = (col >= row * s_pad) & (col < row * s_pad + s_true)
        pool = jnp.where(sel, 1.0 / s_true, 0.0).astype(jnp.float32)
        pooled = jnp.dot(pool, y, preferred_element_type=jnp.float32)  # (nb, C_pad)
        # per-sample scalar modality mask (mask * mean == mean of masked features,
        # valid because the mask is a per-sample scalar).
        o_ref[...] = (pooled * m_ref[...]).astype(o_ref.dtype)


def conv_relu_maskpool(x_nchw, w, b, mask, *, out_channels, k=3, stride=2, pad=1):
    """Fused conv3x3(stride=2,pad=1)+bias+ReLU -> modality mask -> adaptive avg-pool(1).

    x_nchw: (N, Cin, H, W), w: (Cin*k*k, Cout), b: (Cout,), mask: (N,) in {0,1}
    returns pooled features (N, Cout) == mask[:,None] * mean_{H,W} relu(conv(x)).
    """
    N, Cin, H, W = x_nchw.shape
    Ho = (H + 2 * pad - k) // stride + 1
    Wo = (W + 2 * pad - k) // stride + 1
    S = Ho * Wo
    K = Cin * k * k
    Cout = out_channels

    # im2col in one fused XLA op, emitted directly in (N, Ho, Wo, Cin*k*k) layout
    # (no explicit 9-slice / stack / transpose chain, no extra transpose pass).
    # TODO(synk): fully in-kernel patch extraction (shifted loads per tap) not done.
    patches = lax.conv_general_dilated_patches(
        x_nchw.astype(jnp.bfloat16),
        filter_shape=(k, k),
        window_strides=(stride, stride),
        padding=((pad, pad), (pad, pad)),
        dimension_numbers=("NCHW", "OIHW", "NHWC"))
    patches = patches.reshape(N, S, K)

    # TPU-friendly padding: lane dims (K, Cout) -> multiples of 128, sublane -> 8.
    K_pad = _round_up(K, 128)
    C_pad = _round_up(Cout, 128)
    S_pad = _round_up(S, 8)
    nb = 8                                   # images per grid step (sublane tile)
    N_pad = _round_up(N, nb)
    tk = min(512, K_pad)
    kt_steps = K_pad // tk

    patches = jnp.pad(patches, ((0, N_pad - N), (0, S_pad - S), (0, K_pad - K)))
    patches2d = patches.reshape(N_pad * S_pad, K_pad)           # 2-D slab for the MXU
    w_p = jnp.pad(w.astype(jnp.bfloat16), ((0, K_pad - K), (0, C_pad - Cout)))
    b_p = jnp.pad(b.astype(jnp.float32), (0, C_pad - Cout)).reshape(1, C_pad)
    m_p = jnp.pad(mask.astype(jnp.float32), (0, N_pad - N)).reshape(N_pad, 1)

    kern = functools.partial(_conv_pool_kernel, s_true=S, s_pad=S_pad, nb=nb)
    flops = 2 * N_pad * S_pad * K_pad * C_pad
    bytes_accessed = (patches2d.size * 2 + w_p.size * 2 + b_p.size * 4
                      + m_p.size * 4 + N_pad * C_pad * 4)

    out = pl.pallas_call(
        kern,
        out_shape=jax.ShapeDtypeStruct((N_pad, C_pad), jnp.float32),
        grid_spec=pltpu.PrefetchScalarGridSpec(
            num_scalar_prefetch=0,
            grid=(N_pad // nb, kt_steps),    # reduction (K) axis last
            in_specs=[
                pl.BlockSpec((nb * S_pad, tk), lambda n, kt: (n, kt)),
                pl.BlockSpec((tk, C_pad), lambda n, kt: (kt, 0)),
                pl.BlockSpec((1, C_pad), lambda n, kt: (0, 0)),
                pl.BlockSpec((nb, 1), lambda n, kt: (n, 0)),
            ],
            out_specs=pl.BlockSpec((nb, C_pad), lambda n, kt: (n, 0)),
            scratch_shapes=[pltpu.VMEM((nb * S_pad, C_pad), jnp.float32)],
        ),
        compiler_params=pltpu.CompilerParams(
            dimension_semantics=("parallel", "arbitrary"),
            vmem_limit_bytes=_VMEM_LIMIT),
        cost_estimate=pl.CostEstimate(flops=flops, transcendentals=0,
                                      bytes_accessed=bytes_accessed),
    )(patches2d, w_p, b_p, m_p)

    return out[:N, :Cout]


# -----------------------------------------------------------------------------
# Kernel 2: general tiled matmul + bias (used for the fused classification head)
# -----------------------------------------------------------------------------
def _matmul_bias_kernel(x_ref, w_ref, b_ref, o_ref, acc_ref, *, relu):
    @pl.when(pl.program_id(2) == 0)
    def _init():
        acc_ref[...] = jnp.zeros_like(acc_ref)

    acc_ref[...] += jnp.dot(x_ref[...], w_ref[...],
                            preferred_element_type=jnp.float32)

    @pl.when(pl.program_id(2) == pl.num_programs(2) - 1)
    def _finalize():
        y = acc_ref[...] + b_ref[...]
        if relu:
            y = jnp.maximum(y, 0.0)
        o_ref[...] = y.astype(o_ref.dtype)


def matmul_bias(x, w, b, relu=False, out_dtype=jnp.float32):
    """x: (M, K), w: (K, N), b: (N,) -> (M, N). Tiled grid, bf16 MXU, f32 accumulate."""
    M, K = x.shape
    _, N = w.shape
    tm = min(256, _round_up(M, 8))
    tn = min(256, _round_up(N, 128))
    tk = min(512, _round_up(K, 128))
    M_pad, N_pad, K_pad = _round_up(M, tm), _round_up(N, tn), _round_up(K, tk)

    x_p = jnp.pad(x.astype(jnp.bfloat16), ((0, M_pad - M), (0, K_pad - K)))
    w_p = jnp.pad(w.astype(jnp.bfloat16), ((0, K_pad - K), (0, N_pad - N)))
    b_p = jnp.pad(b.astype(jnp.float32), (0, N_pad - N)).reshape(1, N_pad)

    kern = functools.partial(_matmul_bias_kernel, relu=relu)
    flops = 2 * M_pad * N_pad * K_pad
    bytes_accessed = x_p.size * 2 + w_p.size * 2 + b_p.size * 4 + M_pad * N_pad * 4

    out = pl.pallas_call(
        kern,
        out_shape=jax.ShapeDtypeStruct((M_pad, N_pad), out_dtype),
        grid_spec=pltpu.PrefetchScalarGridSpec(
            num_scalar_prefetch=0,
            grid=(M_pad // tm, N_pad // tn, K_pad // tk),   # K (reduction) last
            in_specs=[
                pl.BlockSpec((tm, tk), lambda i, j, k: (i, k)),
                pl.BlockSpec((tk, tn), lambda i, j, k: (k, j)),
                pl.BlockSpec((1, tn), lambda i, j, k: (0, j)),
            ],
            out_specs=pl.BlockSpec((tm, tn), lambda i, j, k: (i, j)),
            scratch_shapes=[pltpu.VMEM((tm, tn), jnp.float32)],
        ),
        compiler_params=pltpu.CompilerParams(
            dimension_semantics=("parallel", "parallel", "arbitrary"),
            vmem_limit_bytes=_VMEM_LIMIT),
        cost_estimate=pl.CostEstimate(flops=flops, transcendentals=0,
                                      bytes_accessed=bytes_accessed),
    )(x_p, w_p, b_p)
    return out[:M, :N]


# -----------------------------------------------------------------------------
# modality_drop (p == [0, 0] branch) and the forward pass
# -----------------------------------------------------------------------------
def modality_drop_masks(batch, key):
    """Per-sample random pick of [1,0]/[0,1]/[1,1] with prob 1/3 each (JAX PRNG)."""
    combos = jnp.array([[1.0, 0.0], [0.0, 1.0], [1.0, 1.0]], jnp.float32)
    idx = jax.random.choice(key, 3, shape=(batch,), p=jnp.full((3,), 1.0 / 3.0))
    p = combos[idx]                              # (B, 2)
    p5 = p[:, :, None, None, None]               # (B, 2, 1, 1, 1) like torch unsqueezes
    return p, p5


def av_classifier_forward(audio, visual, params, key, use_video_frames):
    """Mirrors AVClassifier.forward(audio, visual)."""
    B = audio.shape[0]
    T = use_video_frames
    p, p5 = modality_drop_masks(B, key)

    # audio backbone stem + modality_drop + adaptive_avg_pool2d(1) + flatten, fused.
    a_pool = conv_relu_maskpool(audio, params["wa"], params["ba"],
                                mask=p[:, 0], out_channels=params["wa"].shape[1])

    # visual: per-frame stem + repeat_interleaved mask + per-frame pool, then mean
    # over the T frames == adaptive_avg_pool3d(1) of the permuted 5-D tensor
    # (mean over (T,H,W) is permutation invariant -> no 5-D transpose materialized).
    mask_frames = jnp.repeat(p[:, 1], T)                                   # (B*T,)
    v_frame = conv_relu_maskpool(visual, params["wv"], params["bv"],
                                 mask=mask_frames,
                                 out_channels=params["wv"].shape[1])       # (B*T, C)
    v_pool = jnp.mean(v_frame.reshape(B, T, -1), axis=1)                   # (B, C)

    # ConcatFusion head: out and auxi_out fused into ONE lane-dense matmul.
    fused = jnp.concatenate([a_pool, v_pool], axis=1)                      # (B, 2C)
    w_head = jnp.concatenate([params["w_out"], params["w_aux"]], axis=1)   # (2C, 2*ncls)
    b_head = jnp.concatenate([params["b_out"], params["b_aux"]])
    n_cls = params["w_out"].shape[1]
    heads = matmul_bias(fused, w_head, b_head)                             # (B, 2*ncls)
    out, auxi_out = heads[:, :n_cls], heads[:, n_cls:]

    mul = a_pool * v_pool
    std = jnp.std(fused, axis=1, keepdims=True, ddof=1)   # torch.std default: unbiased

    return a_pool, v_pool, out, auxi_out, mul, std, p5


# -----------------------------------------------------------------------------
# Parameter init + demo
# -----------------------------------------------------------------------------
def init_params(key, c_audio_in, c_visual_in, c_feat, n_classes, k=3):
    ks = jax.random.split(key, 6)
    scale = 0.05
    return {
        "wa": scale * jax.random.normal(ks[0], (c_audio_in * k * k, c_feat), jnp.float32),
        "ba": jnp.zeros((c_feat,), jnp.float32),
        "wv": scale * jax.random.normal(ks[1], (c_visual_in * k * k, c_feat), jnp.float32),
        "bv": jnp.zeros((c_feat,), jnp.float32),
        "w_out": scale * jax.random.normal(ks[2], (2 * c_feat, n_classes), jnp.float32),
        "b_out": jnp.zeros((n_classes,), jnp.float32),
        "w_aux": scale * jax.random.normal(ks[3], (2 * c_feat, n_classes), jnp.float32),
        "b_aux": jnp.zeros((n_classes,), jnp.float32),
    }


if __name__ == "__main__":
    # args stand-in: dataset='CREMAD' -> n_classes=6, fusion='concat', use_video_frames=2
    B, T = 2, 2
    C_FEAT, N_CLASSES = 32, 6

    root = jax.random.PRNGKey(0)
    k_params, k_audio, k_visual, k_drop = jax.random.split(root, 4)

    params = init_params(k_params, c_audio_in=1, c_visual_in=3,
                         c_feat=C_FEAT, n_classes=N_CLASSES)

    audio = jax.random.normal(k_audio, (B, 1, 16, 16), jnp.float32)        # NCHW spectrogram
    visual = jax.random.normal(k_visual, (B * T, 3, 16, 16), jnp.float32)  # NCHW frames (B*T)

    fwd = jax.jit(av_classifier_forward, static_argnames=("use_video_frames",))
    outs = fwd(audio, visual, params, k_drop, use_video_frames=T)
    outs = jax.block_until_ready(outs)

    a_pool, v_pool, out, auxi_out, mul, std, p5 = outs
    assert a_pool.shape == (B, C_FEAT)
    assert v_pool.shape == (B, C_FEAT)
    assert out.shape == (B, N_CLASSES)
    assert auxi_out.shape == (B, N_CLASSES)
    assert mul.shape == (B, C_FEAT)
    assert std.shape == (B, 1)
    assert p5.shape == (B, 2, 1, 1, 1)
    print("KERNEL_OK")
</pallas_src>

<mosaic_0001>
module attributes {stable_mosaic.version = 11 : i64} {
  func.func @_conv_pool_kernel(%arg0: i32, %arg1: i32, %arg2: memref<512x128xbf16, #tpu.memory_space<vmem>>, %arg3: memref<128x128xbf16, #tpu.memory_space<vmem>>, %arg4: memref<1x128xf32, #tpu.memory_space<vmem>>, %arg5: memref<8x1xf32, #tpu.memory_space<vmem>>, %arg6: memref<8x128xf32, #tpu.memory_space<vmem>>, %arg7: memref<512x128xf32, #tpu.memory_space<vmem>>) attributes {dimension_semantics = [#tpu.dimension_semantics<parallel>, #tpu.dimension_semantics<arbitrary>], iteration_bounds = array<i64: 1, 1>, scalar_prefetch = 0 : i64, scratch_operands = 1 : i64, tpu.core_type = #tpu.core_type<tc>, window_params = [{transform_indices = @transform_0, window_bounds = array<i64: 512, 128>}, {transform_indices = @transform_1, window_bounds = array<i64: 128, 128>}, {pipeline_mode = #tpu.pipeline_mode<synchronous>, transform_indices = @transform_2, window_bounds = array<i64: 1, 128>}, {transform_indices = @transform_3, window_bounds = array<i64: 8, 1>}, {transform_indices = @transform_4, window_bounds = array<i64: 8, 128>}]} {
    %c0_i32 = arith.constant 0 : i32
    %0 = arith.cmpi eq, %arg1, %c0_i32 : i32
    %1 = arith.extui %0 : i1 to i32
    %c0_i32_0 = arith.constant 0 : i32
    %2 = arith.cmpi ne, %1, %c0_i32_0 : i32
    scf.if %2 {
      %cst_10 = arith.constant 0.000000e+00 : f32
      %12 = vector.broadcast %cst_10 : f32 to vector<512x128xf32>
      %c0_11 = arith.constant 0 : index
      %c0_12 = arith.constant 0 : index
      %13 = vector.load %arg7[%c0_11, %c0_12] : memref<512x128xf32, #tpu.memory_space<vmem>>, vector<512x128xf32>
      tpu.vector_store %arg7[%c0_11, %c0_12], %12 {strides = array<i32>} : memref<512x128xf32, #tpu.memory_space<vmem>>, vector<512x128xf32>,
    } else {
    }
    %c0 = arith.constant 0 : index
    %c0_1 = arith.constant 0 : index
    %3 = vector.load %arg7[%c0, %c0_1] : memref<512x128xf32, #tpu.memory_space<vmem>>, vector<512x128xf32>
    %c0_2 = arith.constant 0 : index
    %c0_3 = arith.constant 0 : index
    %4 = vector.load %arg2[%c0_2, %c0_3] : memref<512x128xbf16, #tpu.memory_space<vmem>>, vector<512x128xbf16>
    %c0_4 = arith.constant 0 : index
    %c0_5 = arith.constant 0 : index
    %5 = vector.load %arg3[%c0_4, %c0_5] : memref<128x128xbf16, #tpu.memory_space<vmem>>, vector<128x128xbf16>
    %cst = arith.constant dense<0.000000e+00> : vector<512x128xf32>
    %6 = tpu.matmul %4, %5, %cst {dimension_numbers = #tpu.dot_dimension_numbers<[1], [0], [0], [1], [0, 0, 1, 1], [], []>} : vector<512x128xbf16>, vector<128x128xbf16>, vector<512x128xf32> -> vector<512x128xf32>
    %7 = arith.addf %3, %6 : vector<512x128xf32>
    %c0_6 = arith.constant 0 : index
    %c0_7 = arith.constant 0 : index
    %8 = vector.load %arg7[%c0_6, %c0_7] : memref<512x128xf32, #tpu.memory_space<vmem>>, vector<512x128xf32>
    tpu.vector_store %arg7[%c0_6, %c0_7], %7 {strides = array<i32>} : memref<512x128xf32, #tpu.memory_space<vmem>>, vector<512x128xf32>,
    %c0_i32_8 = arith.constant 0 : i32
    %9 = arith.cmpi eq, %arg1, %c0_i32_8 : i32
    %10 = arith.extui %9 : i1 to i32
    %c0_i32_9 = arith.constant 0 : i32
    %11 = arith.cmpi ne, %10, %c0_i32_9 : i32
    scf.if %11 {
      %c0_10 = arith.constant 0 : index
      %c0_11 = arith.constant 0 : index
      %12 = vector.load %arg7[%c0_10, %c0_11] : memref<512x128xf32, #tpu.memory_space<vmem>>, vector<512x128xf32>
      %c0_12 = arith.constant 0 : index
      %c0_13 = arith.constant 0 : index
      %13 = vector.load %arg4[%c0_12, %c0_13] : memref<1x128xf32, #tpu.memory_space<vmem>>, vector<1x128xf32>
      %14 = vector.broadcast %13 : vector<1x128xf32> to vector<512x128xf32>
      %15 = arith.addf %12, %14 : vector<512x128xf32>
      %cst_14 = arith.constant 0.000000e+00 : f32
      %16 = vector.broadcast %cst_14 : f32 to vector<512x128xf32>
      %17 = arith.maximumf %15, %16 : vector<512x128xf32>
      %18 = tpu.iota {dimensions = array<i32: 1>} : vector<8x512xi32>
      %19 = tpu.iota {dimensions = array<i32: 0>} : vector<8x512xi32>
      %c64_i32 = arith.constant 64 : i32
      %20 = vector.broadcast %c64_i32 : i32 to vector<8x512xi32>
      %21 = arith.muli %19, %20 : vector<8x512xi32>
      %22 = arith.cmpi sge, %18, %21 : vector<8x512xi32>
      %c64_i32_15 = arith.constant 64 : i32
      %23 = vector.broadcast %c64_i32_15 : i32 to vector<8x512xi32>
      %24 = arith.muli %19, %23 : vector<8x512xi32>
      %c64_i32_16 = arith.constant 64 : i32
      %25 = vector.broadcast %c64_i32_16 : i32 to vector<8x512xi32>
      %26 = arith.addi %24, %25 : vector<8x512xi32>
      %27 = arith.cmpi slt, %18, %26 : vector<8x512xi32>
      %28 = arith.andi %22, %27 : vector<8x512xi1>
      %cst_17 = arith.constant 1.562500e-02 : f32
      %cst_18 = arith.constant 0.000000e+00 : f32
      %29 = vector.broadcast %cst_17 : f32 to vector<8x512xf32>
      %30 = vector.broadcast %cst_18 : f32 to vector<8x512xf32>
      %31 = arith.select %28, %29, %30 : vector<8x512xi1>, vector<8x512xf32>
      %cst_19 = arith.constant dense<0.000000e+00> : vector<8x128xf32>
      %32 = tpu.matmul %31, %17, %cst_19 {dimension_numbers = #tpu.dot_dimension_numbers<[1], [0], [0], [1], [0, 0, 1, 1], [], []>} : vector<8x512xf32>, vector<512x128xf32>, vector<8x128xf32> -> vector<8x128xf32>
      %c0_20 = arith.constant 0 : index
      %c0_21 = arith.constant 0 : index
      %33 = vector.load %arg5[%c0_20, %c0_21] : memref<8x1xf32, #tpu.memory_space<vmem>>, vector<8x1xf32>
      %34 = vector.broadcast %33 : vector<8x1xf32> to vector<8x128xf32>
      %35 = arith.mulf %32, %34 : vector<8x128xf32>
      %c0_22 = arith.constant 0 : index
      %c0_23 = arith.constant 0 : index
      %36 = vector.load %arg6[%c0_22, %c0_23] : memref<8x128xf32, #tpu.memory_space<vmem>>, vector<8x128xf32>
      tpu.vector_store %arg6[%c0_22, %c0_23], %35 {strides = array<i32>} : memref<8x128xf32, #tpu.memory_space<vmem>>, vector<8x128xf32>,
    } else {
    }
    return
  }
  func.func @transform_0(%arg0: i32, %arg1: i32) -> (i32, i32) {
    %c0_i32 = arith.constant 0 : i32
    return %arg0, %arg1 : i32, i32
  }
  func.func @transform_1(%arg0: i32, %arg1: i32) -> (i32, i32) {
    %c0_i32 = arith.constant 0 : i32
    %c0_i32_0 = arith.constant 0 : i32
    return %arg1, %c0_i32 : i32, i32
  }
  func.func @transform_2(%arg0: i32, %arg1: i32) -> (i32, i32) {
    %c0_i32 = arith.constant 0 : i32
    %c0_i32_0 = arith.constant 0 : i32
    %c0_i32_1 = arith.constant 0 : i32
    return %c0_i32, %c0_i32_0 : i32, i32
  }
  func.func @transform_3(%arg0: i32, %arg1: i32) -> (i32, i32) {
    %c0_i32 = arith.constant 0 : i32
    %c0_i32_0 = arith.constant 0 : i32
    return %arg0, %c0_i32 : i32, i32
  }
  func.func @transform_4(%arg0: i32, %arg1: i32) -> (i32, i32) {
    %c0_i32 = arith.constant 0 : i32
    %c0_i32_0 = arith.constant 0 : i32
    return %arg0, %c0_i32 : i32, i32
  }
}

module attributes {stable_mosaic.version = 11 : i64} {
  func.func @_matmul_bias_kernel(%arg0: i32, %arg1: i32, %arg2: i32, %arg3: memref<8x128xbf16, #tpu.memory_space<vmem>>, %arg4: memref<128x128xbf16, #tpu.memory_space<vmem>>, %arg5: memref<1x128xf32, #tpu.memory_space<vmem>>, %arg6: memref<8x128xf32, #tpu.memory_space<vmem>>, %arg7: memref<8x128xf32, #tpu.memory_space<vmem>>) attributes {dimension_semantics = [#tpu.dimension_semantics<parallel>, #tpu.dimension_semantics<parallel>, #tpu.dimension_semantics<arbitrary>], iteration_bounds = array<i64: 1, 1, 1>, scalar_prefetch = 0 : i64, scratch_operands = 1 : i64, tpu.core_type = #tpu.core_type<tc>, window_params = [{transform_indices = @transform_0, window_bounds = array<i64: 8, 128>}, {transform_indices = @transform_1, window_bounds = array<i64: 128, 128>}, {transform_indices = @transform_2, window_bounds = array<i64: 1, 128>}, {transform_indices = @transform_3, window_bounds = array<i64: 8, 128>}]} {
    %c0_i32 = arith.constant 0 : i32
    %0 = arith.cmpi eq, %arg2, %c0_i32 : i32
    %1 = arith.extui %0 : i1 to i32
    %c0_i32_0 = arith.constant 0 : i32
    %2 = arith.cmpi ne, %1, %c0_i32_0 : i32
    scf.if %2 {
      %cst_10 = arith.constant 0.000000e+00 : f32
      %12 = vector.broadcast %cst_10 : f32 to vector<8x128xf32>
      %c0_11 = arith.constant 0 : index
      %c0_12 = arith.constant 0 : index
      %13 = vector.load %arg7[%c0_11, %c0_12] : memref<8x128xf32, #tpu.memory_space<vmem>>, vector<8x128xf32>
      tpu.vector_store %arg7[%c0_11, %c0_12], %12 {strides = array<i32>} : memref<8x128xf32, #tpu.memory_space<vmem>>, vector<8x128xf32>,
    } else {
    }
    %c0 = arith.constant 0 : index
    %c0_1 = arith.constant 0 : index
    %3 = vector.load %arg7[%c0, %c0_1] : memref<8x128xf32, #tpu.memory_space<vmem>>, vector<8x128xf32>
    %c0_2 = arith.constant 0 : index
    %c0_3 = arith.constant 0 : index
    %4 = vector.load %arg3[%c0_2, %c0_3] : memref<8x128xbf16, #tpu.memory_space<vmem>>, vector<8x128xbf16>
    %c0_4 = arith.constant 0 : index
    %c0_5 = arith.constant 0 : index
    %5 = vector.load %arg4[%c0_4, %c0_5] : memref<128x128xbf16, #tpu.memory_space<vmem>>, vector<128x128xbf16>
    %cst = arith.constant dense<0.000000e+00> : vector<8x128xf32>
    %6 = tpu.matmul %4, %5, %cst {dimension_numbers = #tpu.dot_dimension_numbers<[1], [0], [0], [1], [0, 0, 1, 1], [], []>} : vector<8x128xbf16>, vector<128x128xbf16>, vector<8x128xf32> -> vector<8x128xf32>
    %7 = arith.addf %3, %6 : vector<8x128xf32>
    %c0_6 = arith.constant 0 : index
    %c0_7 = arith.constant 0 : index
    %8 = vector.load %arg7[%c0_6, %c0_7] : memref<8x128xf32, #tpu.memory_space<vmem>>, vector<8x128xf32>
    tpu.vector_store %arg7[%c0_6, %c0_7], %7 {strides = array<i32>} : memref<8x128xf32, #tpu.memory_space<vmem>>, vector<8x128xf32>,
    %c0_i32_8 = arith.constant 0 : i32
    %9 = arith.cmpi eq, %arg2, %c0_i32_8 : i32
    %10 = arith.extui %9 : i1 to i32
    %c0_i32_9 = arith.constant 0 : i32
    %11 = arith.cmpi ne, %10, %c0_i32_9 : i32
    scf.if %11 {
      %c0_10 = arith.constant 0 : index
      %c0_11 = arith.constant 0 : index
      %12 = vector.load %arg7[%c0_10, %c0_11] : memref<8x128xf32, #tpu.memory_space<vmem>>, vector<8x128xf32>
      %c0_12 = arith.constant 0 : index
      %c0_13 = arith.constant 0 : index
      %13 = vector.load %arg5[%c0_12, %c0_13] : memref<1x128xf32, #tpu.memory_space<vmem>>, vector<1x128xf32>
      %14 = vector.broadcast %13 : vector<1x128xf32> to vector<8x128xf32>
      %15 = arith.addf %12, %14 : vector<8x128xf32>
      %c0_14 = arith.constant 0 : index
      %c0_15 = arith.constant 0 : index
      %16 = vector.load %arg6[%c0_14, %c0_15] : memref<8x128xf32, #tpu.memory_space<vmem>>, vector<8x128xf32>
      tpu.vector_store %arg6[%c0_14, %c0_15], %15 {strides = array<i32>} : memref<8x128xf32, #tpu.memory_space<vmem>>, vector<8x128xf32>,
    } else {
    }
    return
  }
  func.func @transform_0(%arg0: i32, %arg1: i32, %arg2: i32) -> (i32, i32) {
    %c0_i32 = arith.constant 0 : i32
    return %arg0, %arg2 : i32, i32
  }
  func.func @transform_1(%arg0: i32, %arg1: i32, %arg2: i32) -> (i32, i32) {
    %c0_i32 = arith.constant 0 : i32
    return %arg2, %arg1 : i32, i32
  }
  func.func @transform_2(%arg0: i32, %arg1: i32, %arg2: i32) -> (i32, i32) {
    %c0_i32 = arith.constant 0 : i32
    %c0_i32_0 = arith.constant 0 : i32
    return %c0_i32, %arg1 : i32, i32
  }
  func.func @transform_3(%arg0: i32, %arg1: i32, %arg2: i32) -> (i32, i32) {
    %c0_i32 = arith.constant 0 : i32
    return %arg0, %arg1 : i32, i32
  }
}

</mosaic_0001>

<llo_original>
// kernel: custom-call
$region0: #{custom-call}
  %s0 = inlined_call_operand.vmem [shape: u32[2], index: 0, kind: output, shape index: {}]

// kernel: mul.13
$region0: #{mul.13}
  #allocation2 [shape = 's32[1]{0}', space=sflag, size = 0x4, scoped, tag = 'scoped memory for mul.13']
  %s0 = inlined_call_operand.vmem [shape: f32[2,32], index: 0, kind: input, shape index: {}]
  %s1 = inlined_call_operand.vmem [shape: f32[2,32], index: 1, kind: input, shape index: {}]
  %s2 = inlined_call_operand.hbm [shape: f32[2,32], index: 2, kind: output, shape index: {}]
  $region1: #{mul.13} parent=0
    #allocation0 [shape = 'u8[1024]{0}', space=vmem, size = 0x400, scoped, tag = 'operand span for operand 2']
    #allocation1 [shape = 's32[1]{0}', space=sflag, size = 0x4, scoped, tag = 'scoped memory for mul.13']
    %3 = vsyncpa [#allocation1], 0
    %v4 = vld [vmem:[%s0] sm:$0x3]
    %v5 = vld [vmem:[%s1] sm:$0x3]
    %6 = xla_tuple %v4, %v5
    %7 = xla_tuple %6
    %v8 = vmul.f32 %v4, %v5
    %9 = xla_tuple %v8
    %10 = vst [vmem:[#allocation0] sm:$0x3] %v8
    %s12 = ssub.s32 32, 32
    %13 = vsyncadd [#allocation1], %s12
    %s15 = sshll.u32 [#allocation0], 4
    %s16 = int_to_ptr.vmem [resolvable:$true] %s15
    %18 = dma.vmem_to_hbm [thread:$0]  %s16, 32, %s2, [#allocation1]
    %19 = dma.done [#allocation1], 32
    %20 = vsyncpa [#allocation1], 1

// kernel: av_classifier_forward.5
$region0: #{av_classifier_forward.5}
  #allocation0 [shape = 'u32[]', space=smem, size = 0x4, offset = 0x4, fixed_abs, tag = 'smem constant byte address 0x4 - core index']
  #allocation1 [shape = 'u32[144,128]{1,0:T(1,128)}', space=vmem, size = 0x12000, scoped, tag = 'internal scratch']
  #allocation2 [shape = 'f32[8,128]{1,0:T(8,128)}', space=vmem, size = 0x1000, scoped, tag = 'scratch operand']
  %s0 = inlined_call_operand.vmem [shape: bf16[8,128], index: 0, kind: input, shape index: {}]
  %s1 = inlined_call_operand.vmem [shape: bf16[128,128], index: 1, kind: input, shape index: {}]
  %s2 = inlined_call_operand.vmem [shape: f32[1,128], index: 2, kind: input, shape index: {}]
  %s3 = inlined_call_operand.vmem [shape: f32[8,128], index: 3, kind: output, shape index: {}]
  %s4 = sld [smem:[#allocation0]]
  $region30: #{av_classifier_forward.5} parent=0
    _
  %s6 = ssub.s32 1, %s4
  %s7 = scalar_select 0, %s6, %s4
  // Predicated region
  $region2: #{av_classifier_forward.5} parent=0 // pred_check
    _
  $region3: #{av_classifier_forward.5} parent=0 // pred_check_branch
    %9 = sbr.rel (0) target = $region5
  $region4: #{av_classifier_forward.5} parent=0 // pred_region
    _
  $region5: #{av_classifier_forward.5} parent=0 // pred_fallthru
    _
  // Predicated region
  $region6: #{av_classifier_forward.5} parent=0 // pred_check
    _
  $region7: #{av_classifier_forward.5} parent=0 // pred_check_branch
    %11 = sbr.rel (0) target = $region9
  $region8: #{av_classifier_forward.5} parent=0 // pred_region
    _
  $region9: #{av_classifier_forward.5} parent=0 // pred_fallthru
    _
  // Predicated region
  $region10: #{av_classifier_forward.5} parent=0 // pred_check
    _
  $region11: #{av_classifier_forward.5} parent=0 // pred_check_branch
    %13 = sbr.rel (0) target = $region13
  $region12: #{av_classifier_forward.5} parent=0 // pred_region
    _
  $region13: #{av_classifier_forward.5} parent=0 // pred_fallthru
    _
  %p15 = scmp.eq.s32.totalorder 0, 0
  // Predicated region
  $region14: #{av_classifier_forward.5} parent=0 // pred_check
    %p16 = pneg %p15
  $region15: #{av_classifier_forward.5} parent=0 // pred_check_branch
    %18 = sbr.rel (%p16) target = $region17
  $region16: #{av_classifier_forward.5} parent=0 // pred_region
    %19 = vst [vmem:[#allocation2] sm:$0xff] 0.0
  $region17: #{av_classifier_forward.5} parent=0 // pred_fallthru
    _
  %v20 = vld [vmem:[#allocation2] sm:$0xff]
  %v21 = vld [vmem:[%s0] sm:$0xf]
  %v22 = vld [vmem:[%s1] sm:$0xf]
  %v23 = vld [vmem:[%s1 + $0x4] sm:$0xf]
  %v24 = vld [vmem:[%s1 + $0x8] sm:$0xf]
  %v25 = vld [vmem:[%s1 + $0xc] sm:$0xf]
  %v26 = vld [vmem:[%s1 + $0x10] sm:$0xf]
  %v27 = vld [vmem:[%s1 + $0x14] sm:$0xf]
  %v28 = vld [vmem:[%s1 + $0x18] sm:$0xf]
  %v29 = vld [vmem:[%s1 + $0x1c] sm:$0xf]
  %v30 = vld [vmem:[%s1 + $0x20] sm:$0xf]
  %v31 = vld [vmem:[%s1 + $0x24] sm:$0xf]
  %v32 = vld [vmem:[%s1 + $0x28] sm:$0xf]
  %v33 = vld [vmem:[%s1 + $0x2c] sm:$0xf]
  %v34 = vld [vmem:[%s1 + $0x30] sm:$0xf]
  %v35 = vld [vmem:[%s1 + $0x34] sm:$0xf]
  %v36 = vld [vmem:[%s1 + $0x38] sm:$0xf]
  %v37 = vld [vmem:[%s1 + $0x3c] sm:$0xf]
  %v54 = vunpack.c.l.b16 %v22
  %v55 = vunpack.c.l.b16 %v23
  %v56 = vunpack.c.l.b16 %v24
  %v57 = vunpack.c.l.b16 %v25
  %v58 = vunpack.c.l.b16 %v26
  %v59 = vunpack.c.l.b16 %v27
  %v60 = vunpack.c.l.b16 %v28
  %v61 = vunpack.c.l.b16 %v29
  %v62 = vunpack.c.l.b16 %v30
  %v63 = vunpack.c.l.b16 %v31
  %v64 = vunpack.c.l.b16 %v32
  %v65 = vunpack.c.l.b16 %v33
  %v66 = vunpack.c.l.b16 %v34
  %v67 = vunpack.c.l.b16 %v35
  %v68 = vunpack.c.l.b16 %v36
  %v69 = vunpack.c.l.b16 %v37
  %v70 = vpack.c.b16 %v55, %v54
  %v71 = vpack.c.b16 %v57, %v56
  %v72 = vpack.c.b16 %v59, %v58
  %v73 = vpack.c.b16 %v61, %v60
  %v74 = vpack.c.b16 %v63, %v62
  %v75 = vpack.c.b16 %v65, %v64
  %v76 = vpack.c.b16 %v67, %v66
  %v77 = vpack.c.b16 %v69, %v68
  %86 = vmatprep.subr.bf16.mxu0 0
  %87 = vmatpush1.bf16.msra.mxu0 %v70
  %88 = vmatprep.subr.bf16.mxu0 0
  %89 = vmatpush1.bf16.msra.mxu0 %v71
  %90 = vmatprep.subr.bf16.mxu0 0
  %91 = vmatpush1.bf16.msra.mxu0 %v72
  %92 = vmatprep.subr.bf16.mxu0 0
  %93 = vmatpush1.bf16.msra.mxu0 %v73
  %94 = vmatprep.subr.bf16.mxu0 0
  %95 = vmatpush1.bf16.msra.mxu0 %v74
  %96 = vmatprep.subr.bf16.mxu0 0
  %97 = vmatpush1.bf16.msra.mxu0 %v75
  %98 = vmatprep.subr.bf16.mxu0 0
  %99 = vmatpush1.bf16.msra.mxu0 %v76
  %100 = vmatprep.subr.bf16.mxu0 0
  %101 = vmatpush1.bf16.msra.mxu0 %v77
  %102 = vmatprep.subr.bf16.mxu0 0
  %103 = vmatpush1.bf16.msra.mxu0 0
  %104 = vmatprep.subr.bf16.mxu0 0
  %105 = vmatpush1.bf16.msra.mxu0 0
  %106 = vmatprep.subr.bf16.mxu0 0
  %107 = vmatpush1.bf16.msra.mxu0 0
  %108 = vmatprep.subr.bf16.mxu0 0
  %109 = vmatpush1.bf16.msra.mxu0 0
  %110 = vmatprep.subr.bf16.mxu0 0
  %111 = vmatpush1.bf16.msra.mxu0 0
  %112 = vmatprep.subr.bf16.mxu0 0
  %113 = vmatpush1.bf16.msra.mxu0 0
  %114 = vmatprep.subr.bf16.mxu0 0
  %115 = vmatpush1.bf16.msra.mxu0 0
  %116 = vmatprep.subr.bf16.mxu0 0
  %117 = vmatpush1.bf16.msra.mxu0 0
  %118 = vmatprep.mubr.bf16.mxu0 0
  %119 = vmatmul.mubr.bf16.gmra.mrb[0].mxu0 %v21
  %v120 = vpop.f32.mrb[0].mxu0
  %v121 = vadd.f32 0.0, %v120
  %v122 = vpop.f32.mrb[0].mxu0
  %v123 = vpop.f32.mrb[0].mxu0
  %v124 = vpop.f32.mrb[0].mxu0
  %125 = vdwg.mxu0
  %v126 = vadd.f32 %v20, %v121
  %127 = vst [vmem:[#allocation2] sm:$0xff] %v126
  // Predicated region
  $region18: #{av_classifier_forward.5} parent=0 // pred_check
    %p128 = pneg %p15
  $region19: #{av_classifier_forward.5} parent=0 // pred_check_branch
    %130 = sbr.rel (%p128) target = $region21
  $region20: #{av_classifier_forward.5} parent=0 // pred_region
    %v131 = vld [vmem:[#allocation2] sm:$0xff]
    %v132 = vld [vmem:[%s2] sm:$0x1]
    %v134 = vlaneseq
    %v135 = vshrl.u32 %v134, 7
    %v136 = vsub.s32 0, %v135
    %v137 = vrot.slane %v132, %v136
    %v139 = vadd.f32 %v131, %v137
    %140 = vst [vmem:[%s3] sm:$0xff] %v139
  $region21: #{av_classifier_forward.5} parent=0 // pred_fallthru
    _
  // Predicated region
  $region22: #{av_classifier_forward.5} parent=0 // pred_check
    _
  $region23: #{av_classifier_forward.5} parent=0 // pred_check_branch
    %142 = sbr.rel (0) target = $region25
  $region24: #{av_classifier_forward.5} parent=0 // pred_region
    _
  $region25: #{av_classifier_forward.5} parent=0 // pred_fallthru
    _
  // Predicated region
  $region26: #{av_classifier_forward.5} parent=0 // pred_check
    _
  $region27: #{av_classifier_forward.5} parent=0 // pred_check_branch
    %144 = sbr.rel (0) target = $region29
  $region28: #{av_classifier_forward.5} parent=0 // pred_region
    _
  $region29: #{av_classifier_forward.5} parent=0 // pred_fallthru
    _

// kernel: av_classifier_forward.4
$region0: #{av_classifier_forward.4}
  #allocation0 [shape = 'u32[]', space=smem, size = 0x4, offset = 0x4, fixed_abs, tag = 'smem constant byte address 0x4 - core index']
  #allocation1 [shape = 'u32[144,128]{1,0:T(1,128)}', space=vmem, size = 0x12000, scoped, tag = 'internal scratch']
  #allocation2 [shape = 'f32[512,128]{1,0:T(8,128)}', space=vmem, size = 0x40000, scoped, tag = 'scratch operand']
  %s0 = inlined_call_operand.vmem [shape: bf16[512,128], index: 0, kind: input, shape index: {}]
  %s1 = inlined_call_operand.vmem [shape: bf16[128,128], index: 1, kind: input, shape index: {}]
  %s2 = inlined_call_operand.vmem [shape: f32[1,128], index: 2, kind: input, shape index: {}]
  %s3 = inlined_call_operand.vmem [shape: f32[8,1], index: 3, kind: input, shape index: {}]
  %s4 = inlined_call_operand.vmem [shape: f32[8,128], index: 4, kind: output, shape index: {}]
  %s5 = sld [smem:[#allocation0]]
  $region34: #{av_classifier_forward.4} parent=0
    _
  %s7 = ssub.s32 1, %s5
  %s8 = scalar_select 0, %s7, %s5
  // Predicated region
  $region2: #{av_classifier_forward.4} parent=0 // pred_check
    _
  $region3: #{av_classifier_forward.4} parent=0 // pred_check_branch
    %10 = sbr.rel (0) target = $region5
  $region4: #{av_classifier_forward.4} parent=0 // pred_region
    _
  $region5: #{av_classifier_forward.4} parent=0 // pred_fallthru
    _
  // Predicated region
  $region6: #{av_classifier_forward.4} parent=0 // pred_check
    _
  $region7: #{av_classifier_forward.4} parent=0 // pred_check_branch
    %12 = sbr.rel (0) target = $region9
  $region8: #{av_classifier_forward.4} parent=0 // pred_region
    _
  $region9: #{av_classifier_forward.4} parent=0 // pred_fallthru
    _
  // Predicated region
  $region10: #{av_classifier_forward.4} parent=0 // pred_check
    _
  $region11: #{av_classifier_forward.4} parent=0 // pred_check_branch
    %14 = sbr.rel (0) target = $region13
  $region12: #{av_classifier_forward.4} parent=0 // pred_region
    _
  $region13: #{av_classifier_forward.4} parent=0 // pred_fallthru
    _
  // Predicated region
  $region14: #{av_classifier_forward.4} parent=0 // pred_check
    _
  $region15: #{av_classifier_forward.4} parent=0 // pred_check_branch
    %16 = sbr.rel (0) target = $region17
  $region16: #{av_classifier_forward.4} parent=0 // pred_region
    _
  $region17: #{av_classifier_forward.4} parent=0 // pred_fallthru
    _
  %p18 = scmp.eq.s32.totalorder 0, 0
  // Predicated region
  $region18: #{av_classifier_forward.4} parent=0 // pred_check
    %p19 = pneg %p18
  $region19: #{av_classifier_forward.4} parent=0 // pred_check_branch
    %21 = sbr.rel (%p19) target = $region21
  $region20: #{av_classifier_forward.4} parent=0 // pred_region
    %22 = vst [vmem:[#allocation2] sm:$0xff] 0.0
    %23 = vst [vmem:[#allocation2 + $0x8] sm:$0xff] 0.0
    %24 = vst [vmem:[#allocation2 + $0x10] sm:$0xff] 0.0
    %25 = vst [vmem:[#allocation2 + $0x18] sm:$0xff] 0.0
    %26 = vst [vmem:[#allocation2 + $0x20] sm:$0xff] 0.0
    %27 = vst [vmem:[#allocation2 + $0x28] sm:$0xff] 0.0
    %28 = vst [vmem:[#allocation2 + $0x30] sm:$0xff] 0.0
    %29 = vst [vmem:[#allocation2 + $0x38] sm:$0xff] 0.0
    %30 = vst [vmem:[#allocation2 + $0x40] sm:$0xff] 0.0
    %31 = vst [vmem:[#allocation2 + $0x48] sm:$0xff] 0.0
    %32 = vst [vmem:[#allocation2 + $0x50] sm:$0xff] 0.0
    %33 = vst [vmem:[#allocation2 + $0x58] sm:$0xff] 0.0
    %34 = vst [vmem:[#allocation2 + $0x60] sm:$0xff] 0.0
    %35 = vst [vmem:[#allocation2 + $0x68] sm:$0xff] 0.0
    %36 = vst [vmem:[#allocation2 + $0x70] sm:$0xff] 0.0
    %37 = vst [vmem:[#allocation2 + $0x78] sm:$0xff] 0.0
    %38 = vst [vmem:[#allocation2 + $0x80] sm:$0xff] 0.0
    %39 = vst [vmem:[#allocation2 + $0x88] sm:$0xff] 0.0
    %40 = vst [vmem:[#allocation2 + $0x90] sm:$0xff] 0.0
    %41 = vst [vmem:[#allocation2 + $0x98] sm:$0xff] 0.0
    %42 = vst [vmem:[#allocation2 + $0xa0] sm:$0xff] 0.0
    %43 = vst [vmem:[#allocation2 + $0xa8] sm:$0xff] 0.0
    %44 = vst [vmem:[#allocation2 + $0xb0] sm:$0xff] 0.0
    %45 = vst [vmem:[#allocation2 + $0xb8] sm:$0xff] 0.0
    %46 = vst [vmem:[#allocation2 + $0xc0] sm:$0xff] 0.0
    %47 = vst [vmem:[#allocation2 + $0xc8] sm:$0xff] 0.0
    %48 = vst [vmem:[#allocation2 + $0xd0] sm:$0xff] 0.0
    %49 = vst [vmem:[#allocation2 + $0xd8] sm:$0xff] 0.0
    %50 = vst [vmem:[#allocation2 + $0xe0] sm:$0xff] 0.0
    %51 = vst [vmem:[#allocation2 + $0xe8] sm:$0xff] 0.0
    %52 = vst [vmem:[#allocation2 + $0xf0] sm:$0xff] 0.0
    %53 = vst [vmem:[#allocation2 + $0xf8] sm:$0xff] 0.0
    %54 = vst [vmem:[#allocation2 + $0x100] sm:$0xff] 0.0
    %55 = vst [vmem:[#allocation2 + $0x108] sm:$0xff] 0.0
    %56 = vst [vmem:[#allocation2 + $0x110] sm:$0xff] 0.0
    %57 = vst [vmem:[#allocation2 + $0x118] sm:$0xff] 0.0
    %58 = vst [vmem:[#allocation2 + $0x120] sm:$0xff] 0.0
    %59 = vst [vmem:[#allocation2 + $0x128] sm:$0xff] 0.0
    %60 = vst [vmem:[#allocation2 + $0x130] sm:$0xff] 0.0
    %61 = vst [vmem:[#allocation2 + $0x138] sm:$0xff] 0.0
    %62 = vst [vmem:[#allocation2 + $0x140] sm:$0xff] 0.0
    %63 = vst [vmem:[#allocation2 + $0x148] sm:$0xff] 0.0
    %64 = vst [vmem:[#allocation2 + $0x150] sm:$0xff] 0.0
    %65 = vst [vmem:[#allocation2 + $0x158] sm:$0xff] 0.0
    %66 = vst [vmem:[#allocation2 + $0x160] sm:$0xff] 0.0
    %67 = vst [vmem:[#allocation2 + $0x168] sm:$0xff] 0.0
    %68 = vst [vmem:[#allocation2 + $0x170] sm:$0xff] 0.0
    %69 = vst [vmem:[#allocation2 + $0x178] sm:$0xff] 0.0
    %70 = vst [vmem:[#allocation2 + $0x180] sm:$0xff] 0.0
    %71 = vst [vmem:[#allocation2 + $0x188] sm:$0xff] 0.0
    %72 = vst [vmem:[#allocation2 + $0x190] sm:$0xff] 0.0
    %73 = vst [vmem:[#allocation2 + $0x198] sm:$0xff] 0.0
    %74 = vst [vmem:[#allocation2 + $0x1a0] sm:$0xff] 0.0
    %75 = vst [vmem:[#allocation2 + $0x1a8] sm:$0xff] 0.0
    %76 = vst [vmem:[#allocation2 + $0x1b0] sm:$0xff] 0.0
    %77 = vst [vmem:[#allocation2 + $0x1b8] sm:$0xff] 0.0
    %78 = vst [vmem:[#allocation2 + $0x1c0] sm:$0xff] 0.0
    %79 = vst [vmem:[#allocation2 + $0x1c8] sm:$0xff] 0.0
    %80 = vst [vmem:[#allocation2 + $0x1d0] sm:$0xff] 0.0
    %81 = vst [vmem:[#allocation2 + $0x1d8] sm:$0xff] 0.0
    %82 = vst [vmem:[#allocation2 + $0x1e0] sm:$0xff] 0.0
    %83 = vst [vmem:[#allocation2 + $0x1e8] sm:$0xff] 0.0
    %84 = vst [vmem:[#allocation2 + $0x1f0] sm:$0xff] 0.0
    %85 = vst [vmem:[#allocation2 + $0x1f8] sm:$0xff] 0.0
  $region21: #{av_classifier_forward.4} parent=0 // pred_fallthru
    _
  %v86 = vld [vmem:[#allocation2] sm:$0xff]
  %v87 = vld [vmem:[#allocation2 + $0x8] sm:$0xff]
  %v88 = vld [vmem:[#allocation2 + $0x10] sm:$0xff]
  %v89 = vld [vmem:[#allocation2 + $0x18] sm:$0xff]
  %v90 = vld [vmem:[#allocation2 + $0x20] sm:$0xff]
  %v91 = vld [vmem:[#allocation2 + $0x28] sm:$0xff]
  %v92 = vld [vmem:[#allocation2 + $0x30] sm:$0xff]
  %v93 = vld [vmem:[#allocation2 + $0x38] sm:$0xff]
  %v94 = vld [vmem:[#allocation2 + $0x40] sm:$0xff]
  %v95 = vld [vmem:[#allocation2 + $0x48] sm:$0xff]
  %v96 = vld [vmem:[#allocation2 + $0x50] sm:$0xff]
  %v97 = vld [vmem:[#allocation2 + $0x58] sm:$0xff]
  %v98 = vld [vmem:[#allocation2 + $0x60] sm:$0xff]
  %v99 = vld [vmem:[#allocation2 + $0x68] sm:$0xff]
  %v100 = vld [vmem:[#allocation2 + $0x70] sm:$0xff]
  %v101 = vld [vmem:[#allocation2 + $0x78] sm:$0xff]
  %v102 = vld [vmem:[#allocation2 + $0x80] sm:$0xff]
  %v103 = vld [vmem:[#allocation2 + $0x88] sm:$0xff]
  %v104 = vld [vmem:[#allocation2 + $0x90] sm:$0xff]
  %v105 = vld [vmem:[#allocation2 + $0x98] sm:$0xff]
  %v106 = vld [vmem:[#allocation2 + $0xa0] sm:$0xff]
  %v107 = vld [vmem:[#allocation2 + $0xa8] sm:$0xff]
  %v108 = vld [vmem:[#allocation2 + $0xb0] sm:$0xff]
  %v109 = vld [vmem:[#allocation2 + $0xb8] sm:$0xff]
  %v110 = vld [vmem:[#allocation2 + $0xc0] sm:$0xff]
  %v111 = vld [vmem:[#allocation2 + $0xc8] sm:$0xff]
  %v112 = vld [vmem:[#allocation2 + $0xd0] sm:$0xff]
  %v113 = vld [vmem:[#allocation2 + $0xd8] sm:$0xff]
  %v114 = vld [vmem:[#allocation2 + $0xe0] sm:$0xff]
  %v115 = vld [vmem:[#allocation2 + $0xe8] sm:$0xff]
  %v116 = vld [vmem:[#allocation2 + $0xf0] sm:$0xff]
  %v117 = vld [vmem:[#allocation2 + $0xf8] sm:$0xff]
  %v118 = vld [vmem:[#allocation2 + $0x100] sm:$0xff]
  %v119 = vld [vmem:[#allocation2 + $0x108] sm:$0xff]
  %v120 = vld [vmem:[#allocation2 + $0x110] sm:$0xff]
  %v121 = vld [vmem:[#allocation2 + $0x118] sm:$0xff]
  %v122 = vld [vmem:[#allocation2 + $0x120] sm:$0xff]
  %v123 = vld [vmem:[#allocation2 + $0x128] sm:$0xff]
  %v124 = vld [vmem:[#allocation2 + $0x130] sm:$0xff]
  %v125 = vld [vmem:[#allocation2 + $0x138] sm:$0xff]
  %v126 = vld [vmem:[#allocation2 + $0x140] sm:$0xff]
  %v127 = vld [vmem:[#allocation2 + $0x148] sm:$0xff]
  %v128 = vld [vmem:[#allocation2 + $0x150] sm:$0xff]
  %v129 = vld [vmem:[#allocation2 + $0x158] sm:$0xff]
  %v130 = vld [vmem:[#allocation2 + $0x160] sm:$0xff]
  %v131 = vld [vmem:[#allocation2 + $0x168] sm:$0xff]
  %v132 = vld [vmem:[#allocation2 + $0x170] sm:$0xff]
  %v133 = vld [vmem:[#allocation2 + $0x178] sm:$0xff]
  %v134 = vld [vmem:[#allocation2 + $0x180] sm:$0xff]
  %v135 = vld [vmem:[#allocation2 + $0x188] sm:$0xff]
  %v136 = vld [vmem:[#allocation2 + $0x190] sm:$0xff]
  %v137 = vld [vmem:[#allocation2 + $0x198] sm:$0xff]
  %v138 = vld [vmem:[#allocation2 + $0x1a0] sm:$0xff]
  %v139 = vld [vmem:[#allocation2 + $0x1a8] sm:$0xff]
  %v140 = vld [vmem:[#allocation2 + $0x1b0] sm:$0xff]
  %v141 = vld [vmem:[#allocation2 + $0x1b8] sm:$0xff]
  %v142 = vld [vmem:[#allocation2 + $0x1c0] sm:$0xff]
  %v143 = vld [vmem:[#allocation2 + $0x1c8] sm:$0xff]
  %v144 = vld [vmem:[#allocation2 + $0x1d0] sm:$0xff]
  %v145 = vld [vmem:[#allocation2 + $0x1d8] sm:$0xff]
  %v146 = vld [vmem:[#allocation2 + $0x1e0] sm:$0xff]
  %v147 = vld [vmem:[#allocation2 + $0x1e8] sm:$0xff]
  %v148 = vld [vmem:[#allocation2 + $0x1f0] sm:$0xff]
  %v149 = vld [vmem:[#allocation2 + $0x1f8] sm:$0xff]
  %v150 = vld [vmem:[%s0] sm:$0xf]
  %v151 = vld [vmem:[%s0 + $0x4] sm:$0xf]
  %v152 = vld [vmem:[%s0 + $0x8] sm:$0xf]
  %v153 = vld [vmem:[%s0 + $0xc] sm:$0xf]
  %v154 = vld [vmem:[%s0 + $0x10] sm:$0xf]
  %v155 = vld [vmem:[%s0 + $0x14] sm:$0xf]
  %v156 = vld [vmem:[%s0 + $0x18] sm:$0xf]
  %v157 = vld [vmem:[%s0 + $0x1c] sm:$0xf]
  %v158 = vld [vmem:[%s0 + $0x20] sm:$0xf]
  %v159 = vld [vmem:[%s0 + $0x24] sm:$0xf]
  %v160 = vld [vmem:[%s0 + $0x28] sm:$0xf]
  %v161 = vld [vmem:[%s0 + $0x2c] sm:$0xf]
  %v162 = vld [vmem:[%s0 + $0x30] sm:$0xf]
  %v163 = vld [vmem:[%s0 + $0x34] sm:$0xf]
  %v164 = vld [vmem:[%s0 + $0x38] sm:$0xf]
  %v165 = vld [vmem:[%s0 + $0x3c] sm:$0xf]
  %v166 = vld [vmem:[%s0 + $0x40] sm:$0xf]
  %v167 = vld [vmem:[%s0 + $0x44] sm:$0xf]
  %v168 = vld [vmem:[%s0 + $0x48] sm:$0xf]
  %v169 = vld [vmem:[%s0 + $0x4c] sm:$0xf]
  %v170 = vld [vmem:[%s0 + $0x50] sm:$0xf]
  %v171 = vld [vmem:[%s0 + $0x54] sm:$0xf]
  %v172 = vld [vmem:[%s0 + $0x58] sm:$0xf]
  %v173 = vld [vmem:[%s0 + $0x5c] sm:$0xf]
  %v174 = vld [vmem:[%s0 + $0x60] sm:$0xf]
  %v175 = vld [vmem:[%s0 + $0x64] sm:$0xf]
  %v176 = vld [vmem:[%s0 + $0x68] sm:$0xf]
  %v177 = vld [vmem:[%s0 + $0x6c] sm:$0xf]
  %v178 = vld [vmem:[%s0 + $0x70] sm:$0xf]
  %v179 = vld [vmem:[%s0 + $0x74] sm:$0xf]
  %v180 = vld [vmem:[%s0 + $0x78] sm:$0xf]
  %v181 = vld [vmem:[%s0 + $0x7c] sm:$0xf]
  %v182 = vld [vmem:[%s0 + $0x80] sm:$0xf]
  %v183 = vld [vmem:[%s0 + $0x84] sm:$0xf]
  %v184 = vld [vmem:[%s0 + $0x88] sm:$0xf]
  %v185 = vld [vmem:[%s0 + $0x8c] sm:$0xf]
  %v186 = vld [vmem:[%s0 + $0x90] sm:$0xf]
  %v187 = vld [vmem:[%s0 + $0x94] sm:$0xf]
  %v188 = vld [vmem:[%s0 + $0x98] sm:$0xf]
  %v189 = vld [vmem:[%s0 + $0x9c] sm:$0xf]
  %v190 = vld [vmem:[%s0 + $0xa0] sm:$0xf]
  %v191 = vld [vmem:[%s0 + $0xa4] sm:$0xf]
  %v192 = vld [vmem:[%s0 + $0xa8] sm:$0xf]
  %v193 = vld [vmem:[%s0 + $0xac] sm:$0xf]
  %v194 = vld [vmem:[%s0 + $0xb0] sm:$0xf]
  %v195 = vld [vmem:[%s0 + $0xb4] sm:$0xf]
  %v196 = vld [vmem:[%s0 + $0xb8] sm:$0xf]
  %v197 = vld [vmem:[%s0 + $0xbc] sm:$0xf]
  %v198 = vld [vmem:[%s0 + $0xc0] sm:$0xf]
  %v199 = vld [vmem:[%s0 + $0xc4] sm:$0xf]
  %v200 = vld [vmem:[%s0 + $0xc8] sm:$0xf]
  %v201 = vld [vmem:[%s0 + $0xcc] sm:$0xf]
  %v202 = vld [vmem:[%s0 + $0xd0] sm:$0xf]
  %v203 = vld [vmem:[%s0 + $0xd4] sm:$0xf]
  %v204 = vld [vmem:[%s0 + $0xd8] sm:$0xf]
  %v205 = vld [vmem:[%s0 + $0xdc] sm:$0xf]
  %v206 = vld [vmem:[%s0 + $0xe0] sm:$0xf]
  %v207 = vld [vmem:[%s0 + $0xe4] sm:$0xf]
  %v208 = vld [vmem:[%s0 + $0xe8] sm:$0xf]
  %v209 = vld [vmem:[%s0 + $0xec] sm:$0xf]
  %v210 = vld [vmem:[%s0 + $0xf0] sm:$0xf]
  %v211 = vld [vmem:[%s0 + $0xf4] sm:$0xf]
  %v212 = vld [vmem:[%s0 + $0xf8] sm:$0xf]
  %v213 = vld [vmem:[%s0 + $0xfc] sm:$0xf]
  %v214 = vld [vmem:[%s1] sm:$0xf]
  %v215 = vld [vmem:[%s1 + $0x4] sm:$0xf]
  %v216 = vld [vmem:[%s1 + $0x8] sm:$0xf]
  %v217 = vld [vmem:[%s1 + $0xc] sm:$0xf]
  %v218 = vld [vmem:[%s1 + $0x10] sm:$0xf]
  %v219 = vld [vmem:[%s1 + $0x14] sm:$0xf]
  %v220 = vld [vmem:[%s1 + $0x18] sm:$0xf]
  %v221 = vld [vmem:[%s1 + $0x1c] sm:$0xf]
  %v222 = vld [vmem:[%s1 + $0x20] sm:$0xf]
  %v223 = vld [vmem:[%s1 + $0x24] sm:$0xf]
  %v224 = vld [vmem:[%s1 + $0x28] sm:$0xf]
  %v225 = vld [vmem:[%s1 + $0x2c] sm:$0xf]
  %v226 = vld [vmem:[%s1 + $0x30] sm:$0xf]
  %v227 = vld [vmem:[%s1 + $0x34] sm:$0xf]
  %v228 = vld [vmem:[%s1 + $0x38] sm:$0xf]
  %v229 = vld [vmem:[%s1 + $0x3c] sm:$0xf]
  %v294 = vunpack.c.l.b16 %v150
  %v295 = vunpack.c.l.b16 %v151
  %v296 = vunpack.c.l.b16 %v152
  %v297 = vunpack.c.l.b16 %v153
  %v298 = vunpack.c.l.b16 %v154
  %v299 = vunpack.c.l.b16 %v155
  %v300 = vunpack.c.l.b16 %v156
  %v301 = vunpack.c.l.b16 %v157
  %v302 = vunpack.c.l.b16 %v158
  %v303 = vunpack.c.l.b16 %v159
  %v304 = vunpack.c.l.b16 %v160
  %v305 = vunpack.c.l.b16 %v161
  %v306 = vunpack.c.l.b16 %v162
  %v307 = vunpack.c.l.b16 %v163
  %v308 = vunpack.c.l.b16 %v164
  %v309 = vunpack.c.l.b16 %v165
  %v310 = vunpack.c.l.b16 %v166
  %v311 = vunpack.c.l.b16 %v167
  %v312 = vunpack.c.l.b16 %v168
  %v313 = vunpack.c.l.b16 %v169
  %v314 = vunpack.c.l.b16 %v170
  %v315 = vunpack.c.l.b16 %v171
  %v316 = vunpack.c.l.b16 %v172
  %v317 = vunpack.c.l.b16 %v173
  %v318 = vunpack.c.l.b16 %v174
  %v319 = vunpack.c.l.b16 %v175
  %v320 = vunpack.c.l.b16 %v176
  %v321 = vunpack.c.l.b16 %v177
  %v322 = vunpack.c.l.b16 %v178
  %v323 = vunpack.c.l.b16 %v179
  %v324 = vunpack.c.l.b16 %v180
  %v325 = vunpack.c.l.b16 %v181
  %v326 = vunpack.c.l.b16 %v182
  %v327 = vunpack.c.l.b16 %v183
  %v328 = vunpack.c.l.b16 %v184
  %v329 = vunpack.c.l.b16 %v185
  %v330 = vunpack.c.l.b16 %v186
  %v331 = vunpack.c.l.b16 %v187
  %v332 = vunpack.c.l.b16 %v188
  %v333 = vunpack.c.l.b16 %v189
  %v334 = vunpack.c.l.b16 %v190
  %v335 = vunpack.c.l.b16 %v191
  %v336 = vunpack.c.l.b16 %v192
  %v337 = vunpack.c.l.b16 %v193
  %v338 = vunpack.c.l.b16 %v194
  %v339 = vunpack.c.l.b16 %v195
  %v340 = vunpack.c.l.b16 %v196
  %v341 = vunpack.c.l.b16 %v197
  %v342 = vunpack.c.l.b16 %v198
  %v343 = vunpack.c.l.b16 %v199
  %v344 = vunpack.c.l.b16 %v200
  %v345 = vunpack.c.l.b16 %v201
  %v346 = vunpack.c.l.b16 %v202
  %v347 = vunpack.c.l.b16 %v203
  %v348 = vunpack.c.l.b16 %v204
  %v349 = vunpack.c.l.b16 %v205
  %v350 = vunpack.c.l.b16 %v206
  %v351 = vunpack.c.l.b16 %v207
  %v352 = vunpack.c.l.b16 %v208
  %v353 = vunpack.c.l.b16 %v209
  %v354 = vunpack.c.l.b16 %v210
  %v355 = vunpack.c.l.b16 %v211
  %v356 = vunpack.c.l.b16 %v212
  %v357 = vunpack.c.l.b16 %v213
  %v358 = vpack.c.b16 %v295, %v294
  %v359 = vpack.c.b16 %v297, %v296
  %v360 = vpack.c.b16 %v299, %v298
  %v361 = vpack.c.b16 %v301, %v300
  %v362 = vpack.c.b16 %v303, %v302
  %v363 = vpack.c.b16 %v305, %v304
  %v364 = vpack.c.b16 %v307, %v306
  %v365 = vpack.c.b16 %v309, %v308
  %v366 = vpack.c.b16 %v311, %v310
  %v367 = vpack.c.b16 %v313, %v312
  %v368 = vpack.c.b16 %v315, %v314
  %v369 = vpack.c.b16 %v317, %v316
  %v370 = vpack.c.b16 %v319, %v318
  %v371 = vpack.c.b16 %v321, %v320
  %v372 = vpack.c.b16 %v323, %v322
  %v373 = vpack.c.b16 %v325, %v324
  %v374 = vpack.c.b16 %v327, %v326
  %v375 = vpack.c.b16 %v329, %v328
  %v376 = vpack.c.b16 %v331, %v330
  %v377 = vpack.c.b16 %v333, %v332
  %v378 = vpack.c.b16 %v335, %v334
  %v379 = vpack.c.b16 %v337, %v336
  %v380 = vpack.c.b16 %v339, %v338
  %v381 = vpack.c.b16 %v341, %v340
  %v382 = vpack.c.b16 %v343, %v342
  %v383 = vpack.c.b16 %v345, %v344
  %v384 = vpack.c.b16 %v347, %v346
  %v385 = vpack.c.b16 %v349, %v348
  %v386 = vpack.c.b16 %v351, %v350
  %v387 = vpack.c.b16 %v353, %v352
  %v388 = vpack.c.b16 %v355, %v354
  %v389 = vpack.c.b16 %v357, %v356
  %v438 = vunpack.c.l.b16 %v214
  %v439 = vunpack.c.l.b16 %v215
  %v440 = vunpack.c.l.b16 %v216
  %v441 = vunpack.c.l.b16 %v217
  %v442 = vunpack.c.l.b16 %v218
  %v443 = vunpack.c.l.b16 %v219
  %v444 = vunpack.c.l.b16 %v220
  %v445 = vunpack.c.l.b16 %v221
  %v446 = vunpack.c.l.b16 %v222
  %v447 = vunpack.c.l.b16 %v223
  %v448 = vunpack.c.l.b16 %v224
  %v449 = vunpack.c.l.b16 %v225
  %v450 = vunpack.c.l.b16 %v226
  %v451 = vunpack.c.l.b16 %v227
  %v452 = vunpack.c.l.b16 %v228
  %v453 = vunpack.c.l.b16 %v229
  %v454 = vpack.c.b16 %v439, %v438
  %v455 = vpack.c.b16 %v441, %v440
  %v456 = vpack.c.b16 %v443, %v442
  %v457 = vpack.c.b16 %v445, %v444
  %v458 = vpack.c.b16 %v447, %v446
  %v459 = vpack.c.b16 %v449, %v448
  %v460 = vpack.c.b16 %v451, %v450
  %v461 = vpack.c.b16 %v453, %v452
  %470 = vmatprep.subr.bf16.mxu0 0
  %471 = vmatpush1.bf16.msra.mxu0 %v454
  %472 = vmatprep.subr.bf16.mxu0 0
  %473 = vmatpush1.bf16.msra.mxu0 %v455
  %474 = vmatprep.subr.bf16.mxu0 0
  %475 = vmatpush1.bf16.msra.mxu0 %v456
  %476 = vmatprep.subr.bf16.mxu0 0
  %477 = vmatpush1.bf16.msra.mxu0 %v457
  %478 = vmatprep.subr.bf16.mxu0 0
  %479 = vmatpush1.bf16.msra.mxu0 %v458
  %480 = vmatprep.subr.bf16.mxu0 0
  %481 = vmatpush1.bf16.msra.mxu0 %v459
  %482 = vmatprep.subr.bf16.mxu0 0
  %483 = vmatpush1.bf16.msra.mxu0 %v460
  %484 = vmatprep.subr.bf16.mxu0 0
  %485 = vmatpush1.bf16.msra.mxu0 %v461
  %486 = vmatprep.subr.bf16.mxu0 0
  %487 = vmatpush1.bf16.msra.mxu0 0
  %488 = vmatprep.subr.bf16.mxu0 0
  %489 = vmatpush1.bf16.msra.mxu0 0
  %490 = vmatprep.subr.bf16.mxu0 0
  %491 = vmatpush1.bf16.msra.mxu0 0
  %492 = vmatprep.subr.bf16.mxu0 0
  %493 = vmatpush1.bf16.msra.mxu0 0
  %494 = vmatprep.subr.bf16.mxu0 0
  %495 = vmatpush1.bf16.msra.mxu0 0
  %496 = vmatprep.subr.bf16.mxu0 0
  %497 = vmatpush1.bf16.msra.mxu0 0
  %498 = vmatprep.subr.bf16.mxu0 0
  %499 = vmatpush1.bf16.msra.mxu0 0
  %500 = vmatprep.subr.bf16.mxu0 0
  %501 = vmatpush1.bf16.msra.mxu0 0
  %502 = vmatprep.mubr.bf16.mxu0 0
  %503 = vmatmul.mubr.bf16.gmra.mrb[0].mxu0 %v358
  %v504 = vpop.f32.mrb[0].mxu0
  %v505 = vadd.f32 0.0, %v504
  %v506 = vpop.f32.mrb[0].mxu0
  %v507 = vpop.f32.mrb[0].mxu0
  %v508 = vadd.f32 0.0, %v507
  %v509 = vpop.f32.mrb[0].mxu0
  %510 = vmatprep.mubr.bf16.mxu0 0
  %511 = vmatmul.mubr.bf16.gmra.mrb[0].mxu0 %v359
  %v512 = vpop.f32.mrb[0].mxu0
  %v513 = vadd.f32 0.0, %v512
  %v514 = vpop.f32.mrb[0].mxu0
  %v515 = vpop.f32.mrb[0].mxu0
  %v516 = vadd.f32 0.0, %v515
  %v517 = vpop.f32.mrb[0].mxu0
  %518 = vmatprep.mubr.bf16.mxu0 0
  %519 = vmatmul.mubr.bf16.gmra.mrb[0].mxu0 %v360
  %v520 = vpop.f32.mrb[0].mxu0
  %v521 = vadd.f32 0.0, %v520
  %v522 = vpop.f32.mrb[0].mxu0
  %v523 = vpop.f32.mrb[0].mxu0
  %v524 = vadd.f32 0.0, %v523
  %v525 = vpop.f32.mrb[0].mxu0
  %526 = vmatprep.mubr.bf16.mxu0 0
  %527 = vmatmul.mubr.bf16.gmra.mrb[0].mxu0 %v361
  %v528 = vpop.f32.mrb[0].mxu0
  %v529 = vadd.f32 0.0, %v528
  %v530 = vpop.f32.mrb[0].mxu0
  %v531 = vpop.f32.mrb[0].mxu0
  %v532 = vadd.f32 0.0, %v531
  %v533 = vpop.f32.mrb[0].mxu0
  %534 = vmatprep.mubr.bf16.mxu0 0
  %535 = vmatmul.mubr.bf16.gmra.mrb[0].mxu0 %v362
  %v536 = vpop.f32.mrb[0].mxu0
  %v537 = vadd.f32 0.0, %v536
  %v538 = vpop.f32.mrb[0].mxu0
  %v539 = vpop.f32.mrb[0].mxu0
  %v540 = vadd.f32 0.0, %v539
  %v541 = vpop.f32.mrb[0].mxu0
  %542 = vmatprep.mubr.bf16.mxu0 0
  %543 = vmatmul.mubr.bf16.gmra.mrb[0].mxu0 %v363
  %v544 = vpop.f32.mrb[0].mxu0
  %v545 = vadd.f32 0.0, %v544
  %v546 = vpop.f32.mrb[0].mxu0
  %v547 = vpop.f32.mrb[0].mxu0
  %v548 = vadd.f32 0.0, %v547
  %v549 = vpop.f32.mrb[0].mxu0
  %550 = vmatprep.mubr.bf16.mxu0 0
  %551 = vmatmul.mubr.bf16.gmra.mrb[0].mxu0 %v364
  %v552 = vpop.f32.mrb[0].mxu0
  %v553 = vadd.f32 0.0, %v552
  %v554 = vpop.f32.mrb[0].mxu0
  %v555 = vpop.f32.mrb[0].mxu0
  %v556 = vadd.f32 0.0, %v555
  %v557 = vpop.f32.mrb[0].mxu0
  %558 = vmatprep.mubr.bf16.mxu0 0
  %559 = vmatmul.mubr.bf16.gmra.mrb[0].mxu0 %v365
  %v560 = vpop.f32.mrb[0].mxu0
  %v561 = vadd.f32 0.0, %v560
  %v562 = vpop.f32.mrb[0].mxu0
  %v563 = vpop.f32.mrb[0].mxu0
  %v564 = vadd.f32 0.0, %v563
  %v565 = vpop.f32.mrb[0].mxu0
  %566 = vmatprep.mubr.bf16.mxu0 0
  %567 = vmatmul.mubr.bf16.gmra.mrb[0].mxu0 %v366
  %v568 = vpop.f32.mrb[0].mxu0
  %v569 = vadd.f32 0.0, %v568
  %v570 = vpop.f32.mrb[0].mxu0
  %v571 = vpop.f32.mrb[0].mxu0
  %v572 = vadd.f32 0.0, %v571
  %v573 = vpop.f32.mrb[0].mxu0
  %574 = vmatprep.mubr.bf16.mxu0 0
  %575 = vmatmul.mubr.bf16.gmra.mrb[0].mxu0 %v367
  %v576 = vpop.f32.mrb[0].mxu0
  %v577 = vadd.f32 0.0, %v576
  %v578 = vpop.f32.mrb[0].mxu0
  %v579 = vpop.f32.mrb[0].mxu0
  %v580 = vadd.f32 0.0, %v579
  %v581 = vpop.f32.mrb[0].mxu0
  %582 = vmatprep.mubr.bf16.mxu0 0
  %583 = vmatmul.mubr.bf16.gmra.mrb[0].mxu0 %v368
  %v584 = vpop.f32.mrb[0].mxu0
  %v585 = vadd.f32 0.0, %v584
  %v586 = vpop.f32.mrb[0].mxu0
  %v587 = vpop.f32.mrb[0].mxu0
  %v588 = vadd.f32 0.0, %v587
  %v589 = vpop.f32.mrb[0].mxu0
  %590 = vmatprep.mubr.bf16.mxu0 0
  %591 = vmatmul.mubr.bf16.gmra.mrb[0].mxu0 %v369
  %v592 = vpop.f32.mrb[0].mxu0
  %v593 = vadd.f32 0.0, %v592
  %v594 = vpop.f32.mrb[0].mxu0
  %v595 = vpop.f32.mrb[0].mxu0
  %v596 = vadd.f32 0.0, %v595
  %v597 = vpop.f32.mrb[0].mxu0
  %598 = vmatprep.mubr.bf16.mxu0 0
  %599 = vmatmul.mubr.bf16.gmra.mrb[0].mxu0 %v370
  %v600 = vpop.f32.mrb[0].mxu0
  %v601 = vadd.f32 0.0, %v600
  %v602 = vpop.f32.mrb[0].mxu0
  %v603 = vpop.f32.mrb[0].mxu0
  %v604 = vadd.f32 0.0, %v603
  %v605 = vpop.f32.mrb[0].mxu0
  %606 = vmatprep.mubr.bf16.mxu0 0
  %607 = vmatmul.mubr.bf16.gmra.mrb[0].mxu0 %v371
  %v608 = vpop.f32.mrb[0].mxu0
  %v609 = vadd.f32 0.0, %v608
  %v610 = vpop.f32.mrb[0].mxu0
  %v611 = vpop.f32.mrb[0].mxu0
  %v612 = vadd.f32 0.0, %v611
  %v613 = vpop.f32.mrb[0].mxu0
  %614 = vmatprep.mubr.bf16.mxu0 0
  %615 = vmatmul.mubr.bf16.gmra.mrb[0].mxu0 %v372
  %v616 = vpop.f32.mrb[0].mxu0
  %v617 = vadd.f32 0.0, %v616
  %v618 = vpop.f32.mrb[0].mxu0
  %v619 = vpop.f32.mrb[0].mxu0
  %v620 = vadd.f32 0.0, %v619
  %v621 = vpop.f32.mrb[0].mxu0
  %622 = vmatprep.mubr.bf16.mxu0 0
  %623 = vmatmul.mubr.bf16.gmra.mrb[0].mxu0 %v373
  %v624 = vpop.f32.mrb[0].mxu0
  %v625 = vadd.f32 0.0, %v624
  %v626 = vpop.f32.mrb[0].mxu0
  %v627 = vpop.f32.mrb[0].mxu0
  %v628 = vadd.f32 0.0, %v627
  %v629 = vpop.f32.mrb[0].mxu0
  %630 = vmatprep.mubr.bf16.mxu0 0
  %631 = vmatmul.mubr.bf16.gmra.mrb[0].mxu0 %v374
  %v632 = vpop.f32.mrb[0].mxu0
  %v633 = vadd.f32 0.0, %v632
  %v634 = vpop.f32.mrb[0].mxu0
  %v635 = vpop.f32.mrb[0].mxu0
  %v636 = vadd.f32 0.0, %v635
  %v637 = vpop.f32.mrb[0].mxu0
  %638 = vmatprep.mubr.bf16.mxu0 0
  %639 = vmatmul.mubr.bf16.gmra.mrb[0].mxu0 %v375
  %v640 = vpop.f32.mrb[0].mxu0
  %v641 = vadd.f32 0.0, %v640
  %v642 = vpop.f32.mrb[0].mxu0
  %v643 = vpop.f32.mrb[0].mxu0
  %v644 = vadd.f32 0.0, %v643
  %v645 = vpop.f32.mrb[0].mxu0
  %646 = vmatprep.mubr.bf16.mxu0 0
  %647 = vmatmul.mubr.bf16.gmra.mrb[0].mxu0 %v376
  %v648 = vpop.f32.mrb[0].mxu0
  %v649 = vadd.f32 0.0, %v648
  %v650 = vpop.f32.mrb[0].mxu0
  %v651 = vpop.f32.mrb[0].mxu0
  %v652 = vadd.f32 0.0, %v651
  %v653 = vpop.f32.mrb[0].mxu0
  %654 = vmatprep.mubr.bf16.mxu0 0
  %655 = vmatmul.mubr.bf16.gmra.mrb[0].mxu0 %v377
  %v656 = vpop.f32.mrb[0].mxu0
  %v657 = vadd.f32 0.0, %v656
  %v658 = vpop.f32.mrb[0].mxu0
  %v659 = vpop.f32.mrb[0].mxu0
  %v660 = vadd.f32 0.0, %v659
  %v661 = vpop.f32.mrb[0].mxu0
  %662 = vmatprep.mubr.bf16.mxu0 0
  %663 = vmatmul.mubr.bf16.gmra.mrb[0].mxu0 %v378
  %v664 = vpop.f32.mrb[0].mxu0
  %v665 = vadd.f32 0.0, %v664
  %v666 = vpop.f32.mrb[0].mxu0
  %v667 = vpop.f32.mrb[0].mxu0
  %v668 = vadd.f32 0.0, %v667
  %v669 = vpop.f32.mrb[0].mxu0
  %670 = vmatprep.mubr.bf16.mxu0 0
  %671 = vmatmul.mubr.bf16.gmra.mrb[0].mxu0 %v379
  %v672 = vpop.f32.mrb[0].mxu0
  %v673 = vadd.f32 0.0, %v672
  %v674 = vpop.f32.mrb[0].mxu0
  %v675 = vpop.f32.mrb[0].mxu0
  %v676 = vadd.f32 0.0, %v675
  %v677 = vpop.f32.mrb[0].mxu0
  %678 = vmatprep.mubr.bf16.mxu0 0
  %679 = vmatmul.mubr.bf16.gmra.mrb[0].mxu0 %v380
  %v680 = vpop.f32.mrb[0].mxu0
  %v681 = vadd.f32 0.0, %v680
  %v682 = vpop.f32.mrb[0].mxu0
  %v683 = vpop.f32.mrb[0].mxu0
  %v684 = vadd.f32 0.0, %v683
  %v685 = vpop.f32.mrb[0].mxu0
  %686 = vmatprep.mubr.bf16.mxu0 0
  %687 = vmatmul.mubr.bf16.gmra.mrb[0].mxu0 %v381
  %v688 = vpop.f32.mrb[0].mxu0
  %v689 = vadd.f32 0.0, %v688
  %v690 = vpop.f32.mrb[0].mxu0
  %v691 = vpop.f32.mrb[0].mxu0
  %v692 = vadd.f32 0.0, %v691
  %v693 = vpop.f32.mrb[0].mxu0
  %694 = vmatprep.mubr.bf16.mxu0 0
  %695 = vmatmul.mubr.bf16.gmra.mrb[0].mxu0 %v382
  %v696 = vpop.f32.mrb[0].mxu0
  %v697 = vadd.f32 0.0, %v696
  %v698 = vpop.f32.mrb[0].mxu0
  %v699 = vpop.f32.mrb[0].mxu0
  %v700 = vadd.f32 0.0, %v699
  %v701 = vpop.f32.mrb[0].mxu0
  %702 = vmatprep.mubr.bf16.mxu0 0
  %703 = vmatmul.mubr.bf16.gmra.mrb[0].mxu0 %v383
  %v704 = vpop.f32.mrb[0].mxu0
  %v705 = vadd.f32 0.0, %v704
  %v706 = vpop.f32.mrb[0].mxu0
  %v707 = vpop.f32.mrb[0].mxu0
  %v708 = vadd.f32 0.0, %v707
  %v709 = vpop.f32.mrb[0].mxu0
  %710 = vmatprep.mubr.bf16.mxu0 0
  %711 = vmatmul.mubr.bf16.gmra.mrb[0].mxu0 %v384
  %v712 = vpop.f32.mrb[0].mxu0
  %v713 = vadd.f32 0.0, %v712
  %v714 = vpop.f32.mrb[0].mxu0
  %v715 = vpop.f32.mrb[0].mxu0
  %v716 = vadd.f32 0.0, %v715
  %v717 = vpop.f32.mrb[0].mxu0
  %718 = vmatprep.mubr.bf16.mxu0 0
  %719 = vmatmul.mubr.bf16.gmra.mrb[0].mxu0 %v385
  %v720 = vpop.f32.mrb[0].mxu0
  %v721 = vadd.f32 0.0, %v720
  %v722 = vpop.f32.mrb[0].mxu0
  %v723 = vpop.f32.mrb[0].mxu0
  %v724 = vadd.f32 0.0, %v723
  %v725 = vpop.f32.mrb[0].mxu0
  %726 = vmatprep.mubr.bf16.mxu0 0
  %727 = vmatmul.mubr.bf16.gmra.mrb[0].mxu0 %v386
  %v728 = vpop.f32.mrb[0].mxu0
  %v729 = vadd.f32 0.0, %v728
  %v730 = vpop.f32.mrb[0].mxu0
  %v731 = vpop.f32.mrb[0].mxu0
  %v732 = vadd.f32 0.0, %v731
  %v733 = vpop.f32.mrb[0].mxu0
  %734 = vmatprep.mubr.bf16.mxu0 0
  %735 = vmatmul.mubr.bf16.gmra.mrb[0].mxu0 %v387
  %v736 = vpop.f32.mrb[0].mxu0
  %v737 = vadd.f32 0.0, %v736
  %v738 = vpop.f32.mrb[0].mxu0
  %v739 = vpop.f32.mrb[0].mxu0
  %v740 = vadd.f32 0.0, %v739
  %v741 = vpop.f32.mrb[0].mxu0
  %742 = vmatprep.mubr.bf16.mxu0 0
  %743 = vmatmul.mubr.bf16.gmra.mrb[0].mxu0 %v388
  %v744 = vpop.f32.mrb[0].mxu0
  %v745 = vadd.f32 0.0, %v744
  %v746 = vpop.f32.mrb[0].mxu0
  %v747 = vpop.f32.mrb[0].mxu0
  %v748 = vadd.f32 0.0, %v747
  %v749 = vpop.f32.mrb[0].mxu0
  %750 = vmatprep.mubr.bf16.mxu0 0
  %751 = vmatmul.mubr.bf16.gmra.mrb[0].mxu0 %v389
  %v752 = vpop.f32.mrb[0].mxu0
  %v753 = vadd.f32 0.0, %v752
  %v754 = vpop.f32.mrb[0].mxu0
  %v755 = vpop.f32.mrb[0].mxu0
  %v756 = vadd.f32 0.0, %v755
  %v757 = vpop.f32.mrb[0].mxu0
  %758 = vdwg.mxu0
  %v759 = vadd.f32 %v86, %v505
  %v760 = vadd.f32 %v87, %v508
  %v761 = vadd.f32 %v88, %v513
  %v762 = vadd.f32 %v89, %v516
  %v763 = vadd.f32 %v90, %v521
  %v764 = vadd.f32 %v91, %v524
  %v765 = vadd.f32 %v92, %v529
  %v766 = vadd.f32 %v93, %v532
  %v767 = vadd.f32 %v94, %v537
  %v768 = vadd.f32 %v95, %v540
  %v769 = vadd.f32 %v96, %v545
  %v770 = vadd.f32 %v97, %v548
  %v771 = vadd.f32 %v98, %v553
  %v772 = vadd.f32 %v99, %v556
  %v773 = vadd.f32 %v100, %v561
  %v774 = vadd.f32 %v101, %v564
  %v775 = vadd.f32 %v102, %v569
  %v776 = vadd.f32 %v103, %v572
  %v777 = vadd.f32 %v104, %v577
  %v778 = vadd.f32 %v105, %v580
  %v779 = vadd.f32 %v106, %v585
  %v780 = vadd.f32 %v107, %v588
  %v781 = vadd.f32 %v108, %v593
  %v782 = vadd.f32 %v109, %v596
  %v783 = vadd.f32 %v110, %v601
  %v784 = vadd.f32 %v111, %v604
  %v785 = vadd.f32 %v112, %v609
  %v786 = vadd.f32 %v113, %v612
  %v787 = vadd.f32 %v114, %v617
  %v788 = vadd.f32 %v115, %v620
  %v789 = vadd.f32 %v116, %v625
  %v790 = vadd.f32 %v117, %v628
  %v791 = vadd.f32 %v118, %v633
  %v792 = vadd.f32 %v119, %v636
  %v793 = vadd.f32 %v120, %v641
  %v794 = vadd.f32 %v121, %v644
  %v795 = vadd.f32 %v122, %v649
  %v796 = vadd.f32 %v123, %v652
  %v797 = vadd.f32 %v124, %v657
  %v798 = vadd.f32 %v125, %v660
  %v799 = vadd.f32 %v126, %v665
  %v800 = vadd.f32 %v127, %v668
  %v801 = vadd.f32 %v128, %v673
  %v802 = vadd.f32 %v129, %v676
  %v803 = vadd.f32 %v130, %v681
  %v804 = vadd.f32 %v131, %v684
  %v805 = vadd.f32 %v132, %v689
  %v806 = vadd.f32 %v133, %v692
  %v807 = vadd.f32 %v134, %v697
  %v808 = vadd.f32 %v135, %v700
  %v809 = vadd.f32 %v136, %v705
  %v810 = vadd.f32 %v137, %v708
  %v811 = vadd.f32 %v138, %v713
  %v812 = vadd.f32 %v139, %v716
  %v813 = vadd.f32 %v140, %v721
  %v814 = vadd.f32 %v141, %v724
  %v815 = vadd.f32 %v142, %v729
  %v816 = vadd.f32 %v143, %v732
  %v817 = vadd.f32 %v144, %v737
  %v818 = vadd.f32 %v145, %v740
  %v819 = vadd.f32 %v146, %v745
  %v820 = vadd.f32 %v147, %v748
  %v821 = vadd.f32 %v148, %v753
  %v822 = vadd.f32 %v149, %v756
  %823 = vst [vmem:[#allocation2] sm:$0xff] %v759
  %824 = vst [vmem:[#allocation2 + $0x8] sm:$0xff] %v760
  %825 = vst [vmem:[#allocation2 + $0x10] sm:$0xff] %v761
  %826 = vst [vmem:[#allocation2 + $0x18] sm:$0xff] %v762
  %827 = vst [vmem:[#allocation2 + $0x20] sm:$0xff] %v763
  %828 = vst [vmem:[#allocation2 + $0x28] sm:$0xff] %v764
  %829 = vst [vmem:[#allocation2 + $0x30] sm:$0xff] %v765
  %830 = vst [vmem:[#allocation2 + $0x38] sm:$0xff] %v766
  %831 = vst [vmem:[#allocation2 + $0x40] sm:$0xff] %v767
  %832 = vst [vmem:[#allocation2 + $0x48] sm:$0xff] %v768
  %833 = vst [vmem:[#allocation2 + $0x50] sm:$0xff] %v769
  %834 = vst [vmem:[#allocation2 + $0x58] sm:$0xff] %v770
  %835 = vst [vmem:[#allocation2 + $0x60] sm:$0xff] %v771
  %836 = vst [vmem:[#allocation2 + $0x68] sm:$0xff] %v772
  %837 = vst [vmem:[#allocation2 + $0x70] sm:$0xff] %v773
  %838 = vst [vmem:[#allocation2 + $0x78] sm:$0xff] %v774
  %839 = vst [vmem:[#allocation2 + $0x80] sm:$0xff] %v775
  %840 = vst [vmem:[#allocation2 + $0x88] sm:$0xff] %v776
  %841 = vst [vmem:[#allocation2 + $0x90] sm:$0xff] %v777
  %842 = vst [vmem:[#allocation2 + $0x98] sm:$0xff] %v778
  %843 = vst [vmem:[#allocation2 + $0xa0] sm:$0xff] %v779
  %844 = vst [vmem:[#allocation2 + $0xa8] sm:$0xff] %v780
  %845 = vst [vmem:[#allocation2 + $0xb0] sm:$0xff] %v781
  %846 = vst [vmem:[#allocation2 + $0xb8] sm:$0xff] %v782
  %847 = vst [vmem:[#allocation2 + $0xc0] sm:$0xff] %v783
  %848 = vst [vmem:[#allocation2 + $0xc8] sm:$0xff] %v784
  %849 = vst [vmem:[#allocation2 + $0xd0] sm:$0xff] %v785
  %850 = vst [vmem:[#allocation2 + $0xd8] sm:$0xff] %v786
  %851 = vst [vmem:[#allocation2 + $0xe0] sm:$0xff] %v787
  %852 = vst [vmem:[#allocation2 + $0xe8] sm:$0xff] %v788
  %853 = vst [vmem:[#allocation2 + $0xf0] sm:$0xff] %v789
  %854 = vst [vmem:[#allocation2 + $0xf8] sm:$0xff] %v790
  %855 = vst [vmem:[#allocation2 + $0x100] sm:$0xff] %v791
  %856 = vst [vmem:[#allocation2 + $0x108] sm:$0xff] %v792
  %857 = vst [vmem:[#allocation2 + $0x110] sm:$0xff] %v793
  %858 = vst [vmem:[#allocation2 + $0x118] sm:$0xff] %v794
  %859 = vst [vmem:[#allocation2 + $0x120] sm:$0xff] %v795
  %860 = vst [vmem:[#allocation2 + $0x128] sm:$0xff] %v796
  %861 = vst [vmem:[#allocation2 + $0x130] sm:$0xff] %v797
  %862 = vst [vmem:[#allocation2 + $0x138] sm:$0xff] %v798
  %863 = vst [vmem:[#allocation2 + $0x140] sm:$0xff] %v799
  %864 = vst [vmem:[#allocation2 + $0x148] sm:$0xff] %v800
  %865 = vst [vmem:[#allocation2 + $0x150] sm:$0xff] %v801
  %866 = vst [vmem:[#allocation2 + $0x158] sm:$0xff] %v802
  %867 = vst [vmem:[#allocation2 + $0x160] sm:$0xff] %v803
  %868 = vst [vmem:[#allocation2 + $0x168] sm:$0xff] %v804
  %869 = vst [vmem:[#allocation2 + $0x170] sm:$0xff] %v805
  %870 = vst [vmem:[#allocation2 + $0x178] sm:$0xff] %v806
  %871 = vst [vmem:[#allocation2 + $0x180] sm:$0xff] %v807
  %872 = vst [vmem:[#allocation2 + $0x188] sm:$0xff] %v808
  %873 = vst [vmem:[#allocation2 + $0x190] sm:$0xff] %v809
  %874 = vst [vmem:[#allocation2 + $0x198] sm:$0xff] %v810
  %875 = vst [vmem:[#allocation2 + $0x1a0] sm:$0xff] %v811
  %876 = vst [vmem:[#allocation2 + $0x1a8] sm:$0xff] %v812
  %877 = vst [vmem:[#allocation2 + $0x1b0] sm:$0xff] %v813
  %878 = vst [vmem:[#allocation2 + $0x1b8] sm:$0xff] %v814
  %879 = vst [vmem:[#allocation2 + $0x1c0] sm:$0xff] %v815
  %880 = vst [vmem:[#allocation2 + $0x1c8] sm:$0xff] %v816
  %881 = vst [vmem:[#allocation2 + $0x1d0] sm:$0xff] %v817
  %882 = vst [vmem:[#allocation2 + $0x1d8] sm:$0xff] %v818
  %883 = vst [vmem:[#allocation2 + $0x1e0] sm:$0xff] %v819
  %884 = vst [vmem:[#allocation2 + $0x1e8] sm:$0xff] %v820
  %885 = vst [vmem:[#allocation2 + $0x1f0] sm:$0xff] %v821
  %886 = vst [vmem:[#allocation2 + $0x1f8] sm:$0xff] %v822
  // Predicated region
  $region22: #{av_classifier_forward.4} parent=0 // pred_check
    %p887 = pneg %p18
  $region23: #{av_classifier_forward.4} parent=0 // pred_check_branch
    %889 = sbr.rel (%p887) target = $region25
  $region24: #{av_classifier_forward.4} parent=0 // pred_region
    %v890 = vld [vmem:[#allocation2] sm:$0xff]
    %v891 = vld [vmem:[#allocation2 + $0x8] sm:$0xff]
    %v892 = vld [vmem:[#allocation2 + $0x10] sm:$0xff]
    %v893 = vld [vmem:[#allocation2 + $0x18] sm:$0xff]
    %v894 = vld [vmem:[#allocation2 + $0x20] sm:$0xff]
    %v895 = vld [vmem:[#allocation2 + $0x28] sm:$0xff]
    %v896 = vld [vmem:[#allocation2 + $0x30] sm:$0xff]
    %v897 = vld [vmem:[#allocation2 + $0x38] sm:$0xff]
    %v898 = vld [vmem:[#allocation2 + $0x40] sm:$0xff]
    %v899 = vld [vmem:[#allocation2 + $0x48] sm:$0xff]
    %v900 = vld [vmem:[#allocation2 + $0x50] sm:$0xff]
    %v901 = vld [vmem:[#allocation2 + $0x58] sm:$0xff]
    %v902 = vld [vmem:[#allocation2 + $0x60] sm:$0xff]
    %v903 = vld [vmem:[#allocation2 + $0x68] sm:$0xff]
    %v904 = vld [vmem:[#allocation2 + $0x70] sm:$0xff]
    %v905 = vld [vmem:[#allocation2 + $0x78] sm:$0xff]
    %v906 = vld [vmem:[#allocation2 + $0x80] sm:$0xff]
    %v907 = vld [vmem:[#allocation2 + $0x88] sm:$0xff]
    %v908 = vld [vmem:[#allocation2 + $0x90] sm:$0xff]
    %v909 = vld [vmem:[#allocation2 + $0x98] sm:$0xff]
    %v910 = vld [vmem:[#allocation2 + $0xa0] sm:$0xff]
    %v911 = vld [vmem:[#allocation2 + $0xa8] sm:$0xff]
    %v912 = vld [vmem:[#allocation2 + $0xb0] sm:$0xff]
    %v913 = vld [vmem:[#allocation2 + $0xb8] sm:$0xff]
    %v914 = vld [vmem:[#allocation2 + $0xc0] sm:$0xff]
    %v915 = vld [vmem:[#allocation2 + $0xc8] sm:$0xff]
    %v916 = vld [vmem:[#allocation2 + $0xd0] sm:$0xff]
    %v917 = vld [vmem:[#allocation2 + $0xd8] sm:$0xff]
    %v918 = vld [vmem:[#allocation2 + $0xe0] sm:$0xff]
    %v919 = vld [vmem:[#allocation2 + $0xe8] sm:$0xff]
    %v920 = vld [vmem:[#allocation2 + $0xf0] sm:$0xff]
    %v921 = vld [vmem:[#allocation2 + $0xf8] sm:$0xff]
    %v922 = vld [vmem:[#allocation2 + $0x100] sm:$0xff]
    %v923 = vld [vmem:[#allocation2 + $0x108] sm:$0xff]
    %v924 = vld [vmem:[#allocation2 + $0x110] sm:$0xff]
    %v925 = vld [vmem:[#allocation2 + $0x118] sm:$0xff]
    %v926 = vld [vmem:[#allocation2 + $0x120] sm:$0xff]
    %v927 = vld [vmem:[#allocation2 + $0x128] sm:$0xff]
    %v928 = vld [vmem:[#allocation2 + $0x130] sm:$0xff]
    %v929 = vld [vmem:[#allocation2 + $0x138] sm:$0xff]
    %v930 = vld [vmem:[#allocation2 + $0x140] sm:$0xff]
    %v931 = vld [vmem:[#allocation2 + $0x148] sm:$0xff]
    %v932 = vld [vmem:[#allocation2 + $0x150] sm:$0xff]
    %v933 = vld [vmem:[#allocation2 + $0x158] sm:$0xff]
    %v934 = vld [vmem:[#allocation2 + $0x160] sm:$0xff]
    %v935 = vld [vmem:[#allocation2 + $0x168] sm:$0xff]
    %v936 = vld [vmem:[#allocation2 + $0x170] sm:$0xff]
    %v937 = vld [vmem:[#allocation2 + $0x178] sm:$0xff]
    %v938 = vld [vmem:[#allocation2 + $0x180] sm:$0xff]
    %v939 = vld [vmem:[#allocation2 + $0x188] sm:$0xff]
    %v940 = vld [vmem:[#allocation2 + $0x190] sm:$0xff]
    %v941 = vld [vmem:[#allocation2 + $0x198] sm:$0xff]
    %v942 = vld [vmem:[#allocation2 + $0x1a0] sm:$0xff]
    %v943 = vld [vmem:[#allocation2 + $0x1a8] sm:$0xff]
    %v944 = vld [vmem:[#allocation2 + $0x1b0] sm:$0xff]
    %v945 = vld [vmem:[#allocation2 + $0x1b8] sm:$0xff]
    %v946 = vld [vmem:[#allocation2 + $0x1c0] sm:$0xff]
    %v947 = vld [vmem:[#allocation2 + $0x1c8] sm:$0xff]
    %v948 = vld [vmem:[#allocation2 + $0x1d0] sm:$0xff]
    %v949 = vld [vmem:[#allocation2 + $0x1d8] sm:$0xff]
    %v950 = vld [vmem:[#allocation2 + $0x1e0] sm:$0xff]
    %v951 = vld [vmem:[#allocation2 + $0x1e8] sm:$0xff]
    %v952 = vld [vmem:[#allocation2 + $0x1f0] sm:$0xff]
    %v953 = vld [vmem:[#allocation2 + $0x1f8] sm:$0xff]
    %v954 = vld [vmem:[%s2] sm:$0x1]
    %v956 = vlaneseq
    %v957 = vshrl.u32 %v956, 7
    %v958 = vsub.s32 0, %v957
    %v959 = vrot.slane %v954, %v958
    %v961 = vadd.f32 %v890, %v959
    %v962 = vadd.f32 %v891, %v959
    %v963 = vadd.f32 %v892, %v959
    %v964 = vadd.f32 %v893, %v959
    %v965 = vadd.f32 %v894, %v959
    %v966 = vadd.f32 %v895, %v959
    %v967 = vadd.f32 %v896, %v959
    %v968 = vadd.f32 %v897, %v959
    %v969 = vadd.f32 %v898, %v959
    %v970 = vadd.f32 %v899, %v959
    %v971 = vadd.f32 %v900, %v959
    %v972 = vadd.f32 %v901, %v959
    %v973 = vadd.f32 %v902, %v959
    %v974 = vadd.f32 %v903, %v959
    %v975 = vadd.f32 %v904, %v959
    %v976 = vadd.f32 %v905, %v959
    %v977 = vadd.f32 %v906, %v959
    %v978 = vadd.f32 %v907, %v959
    %v979 = vadd.f32 %v908, %v959
    %v980 = vadd.f32 %v909, %v959
    %v981 = vadd.f32 %v910, %v959
    %v982 = vadd.f32 %v911, %v959
    %v983 = vadd.f32 %v912, %v959
    %v984 = vadd.f32 %v913, %v959
    %v985 = vadd.f32 %v914, %v959
    %v986 = vadd.f32 %v915, %v959
    %v987 = vadd.f32 %v916, %v959
    %v988 = vadd.f32 %v917, %v959
    %v989 = vadd.f32 %v918, %v959
    %v990 = vadd.f32 %v919, %v959
    %v991 = vadd.f32 %v920, %v959
    %v992 = vadd.f32 %v921, %v959
    %v993 = vadd.f32 %v922, %v959
    %v994 = vadd.f32 %v923, %v959
    %v995 = vadd.f32 %v924, %v959
    %v996 = vadd.f32 %v925, %v959
    %v997 = vadd.f32 %v926, %v959
    %v998 = vadd.f32 %v927, %v959
    %v999 = vadd.f32 %v928, %v959
    %v1000 = vadd.f32 %v929, %v959
    %v1001 = vadd.f32 %v930, %v959
    %v1002 = vadd.f32 %v931, %v959
    %v1003 = vadd.f32 %v932, %v959
    %v1004 = vadd.f32 %v933, %v959
    %v1005 = vadd.f32 %v934, %v959
    %v1006 = vadd.f32 %v935, %v959
    %v1007 = vadd.f32 %v936, %v959
    %v1008 = vadd.f32 %v937, %v959
    %v1009 = vadd.f32 %v938, %v959
    %v1010 = vadd.f32 %v939, %v959
    %v1011 = vadd.f32 %v940, %v959
    %v1012 = vadd.f32 %v941, %v959
    %v1013 = vadd.f32 %v942, %v959
    %v1014 = vadd.f32 %v943, %v959
    %v1015 = vadd.f32 %v944, %v959
    %v1016 = vadd.f32 %v945, %v959
    %v1017 = vadd.f32 %v946, %v959
    %v1018 = vadd.f32 %v947, %v959
    %v1019 = vadd.f32 %v948, %v959
    %v1020 = vadd.f32 %v949, %v959
    %v1021 = vadd.f32 %v950, %v959
    %v1022 = vadd.f32 %v951, %v959
    %v1023 = vadd.f32 %v952, %v959
    %v1024 = vadd.f32 %v953, %v959
    %v1025 = vmax.f32 %v961, 0.0
    %v1026 = vmax.f32 %v962, 0.0
    %v1027 = vmax.f32 %v963, 0.0
    %v1028 = vmax.f32 %v964, 0.0
    %v1029 = vmax.f32 %v965, 0.0
    %v1030 = vmax.f32 %v966, 0.0
    %v1031 = vmax.f32 %v967, 0.0
    %v1032 = vmax.f32 %v968, 0.0
    %v1033 = vmax.f32 %v969, 0.0
    %v1034 = vmax.f32 %v970, 0.0
    %v1035 = vmax.f32 %v971, 0.0
    %v1036 = vmax.f32 %v972, 0.0
    %v1037 = vmax.f32 %v973, 0.0
    %v1038 = vmax.f32 %v974, 0.0
    %v1039 = vmax.f32 %v975, 0.0
    %v1040 = vmax.f32 %v976, 0.0
    %v1041 = vmax.f32 %v977, 0.0
    %v1042 = vmax.f32 %v978, 0.0
    %v1043 = vmax.f32 %v979, 0.0
    %v1044 = vmax.f32 %v980, 0.0
    %v1045 = vmax.f32 %v981, 0.0
    %v1046 = vmax.f32 %v982, 0.0
    %v1047 = vmax.f32 %v983, 0.0
    %v1048 = vmax.f32 %v984, 0.0
    %v1049 = vmax.f32 %v985, 0.0
    %v1050 = vmax.f32 %v986, 0.0
    %v1051 = vmax.f32 %v987, 0.0
    %v1052 = vmax.f32 %v988, 0.0
    %v1053 = vmax.f32 %v989, 0.0
    %v1054 = vmax.f32 %v990, 0.0
    %v1055 = vmax.f32 %v991, 0.0
    %v1056 = vmax.f32 %v992, 0.0
    %v1057 = vmax.f32 %v993, 0.0
    %v1058 = vmax.f32 %v994, 0.0
    %v1059 = vmax.f32 %v995, 0.0
    %v1060 = vmax.f32 %v996, 0.0
    %v1061 = vmax.f32 %v997, 0.0
    %v1062 = vmax.f32 %v998, 0.0
    %v1063 = vmax.f32 %v999, 0.0
    %v1064 = vmax.f32 %v1000, 0.0
    %v1065 = vmax.f32 %v1001, 0.0
    %v1066 = vmax.f32 %v1002, 0.0
    %v1067 = vmax.f32 %v1003, 0.0
    %v1068 = vmax.f32 %v1004, 0.0
    %v1069 = vmax.f32 %v1005, 0.0
    %v1070 = vmax.f32 %v1006, 0.0
    %v1071 = vmax.f32 %v1007, 0.0
    %v1072 = vmax.f32 %v1008, 0.0
    %v1073 = vmax.f32 %v1009, 0.0
    %v1074 = vmax.f32 %v1010, 0.0
    %v1075 = vmax.f32 %v1011, 0.0
    %v1076 = vmax.f32 %v1012, 0.0
    %v1077 = vmax.f32 %v1013, 0.0
    %v1078 = vmax.f32 %v1014, 0.0
    %v1079 = vmax.f32 %v1015, 0.0
    %v1080 = vmax.f32 %v1016, 0.0
    %v1081 = vmax.f32 %v1017, 0.0
    %v1082 = vmax.f32 %v1018, 0.0
    %v1083 = vmax.f32 %v1019, 0.0
    %v1084 = vmax.f32 %v1020, 0.0
    %v1085 = vmax.f32 %v1021, 0.0
    %v1086 = vmax.f32 %v1022, 0.0
    %v1087 = vmax.f32 %v1023, 0.0
    %v1088 = vmax.f32 %v1024, 0.0
    %v1089 = vlaneseq
    %v1090 = vand.u32 %v1089, 127
    %v1091 = vadd.s32 %v1090, 128
    %v1092 = vadd.s32 %v1090, 256
    %v1093 = vadd.s32 %v1090, 384
    %v1094 = vlaneseq
    %v1095 = vshrl.u32 %v1094, 7
    %v1096 = vmul.u32 %v1095, 64
    %vm1097 = vcmp.ge.s32.totalorder %v1090, %v1096
    %vm1098 = vcmp.ge.s32.totalorder %v1091, %v1096
    %vm1099 = vcmp.ge.s32.totalorder %v1092, %v1096
    %vm1100 = vcmp.ge.s32.totalorder %v1093, %v1096
    %v1101 = vadd.s32 %v1096, 64
    %vm1102 = vcmp.lt.s32.totalorder %v1090, %v1101
    %vm1103 = vcmp.lt.s32.totalorder %v1091, %v1101
    %vm1104 = vcmp.lt.s32.totalorder %v1092, %v1101
    %vm1105 = vcmp.lt.s32.totalorder %v1093, %v1101
    %vm1106 = vmand %vm1097, %vm1102
    %vm1107 = vmand %vm1098, %vm1103
    %vm1108 = vmand %vm1099, %vm1104
    %vm1109 = vmand %vm1100, %vm1105
    %v1110 = vsel %vm1106, 0.015625, 0.0
    %v1111 = vsel %vm1107, 0.015625, 0.0
    %v1112 = vsel %vm1108, 0.015625, 0.0
    %v1113 = vsel %vm1109, 0.015625, 0.0
    %1114 = vmatprep.subr.mxu0 0.0
    %1115 = vmatpush1.msra.mxu0 %v1025
    %1116 = vmatprep.subr.mxu0 0.0
    %1117 = vmatpush1.msra.mxu0 %v1026
    %1118 = vmatprep.subr.mxu0 0.0
    %1119 = vmatpush1.msra.mxu0 %v1027
    %1120 = vmatprep.subr.mxu0 0.0
    %1121 = vmatpush1.msra.mxu0 %v1028
    %1122 = vmatprep.subr.mxu0 0.0
    %1123 = vmatpush1.msra.mxu0 %v1029
    %1124 = vmatprep.subr.mxu0 0.0
    %1125 = vmatpush1.msra.mxu0 %v1030
    %1126 = vmatprep.subr.mxu0 0.0
    %1127 = vmatpush1.msra.mxu0 %v1031
    %1128 = vmatprep.subr.mxu0 0.0
    %1129 = vmatpush1.msra.mxu0 %v1032
    %1130 = vmatprep.subr.mxu0 0.0
    %1131 = vmatpush1.msra.mxu0 %v1033
    %1132 = vmatprep.subr.mxu0 0.0
    %1133 = vmatpush1.msra.mxu0 %v1034
    %1134 = vmatprep.subr.mxu0 0.0
    %1135 = vmatpush1.msra.mxu0 %v1035
    %1136 = vmatprep.subr.mxu0 0.0
    %1137 = vmatpush1.msra.mxu0 %v1036
    %1138 = vmatprep.subr.mxu0 0.0
    %1139 = vmatpush1.msra.mxu0 %v1037
    %1140 = vmatprep.subr.mxu0 0.0
    %1141 = vmatpush1.msra.mxu0 %v1038
    %1142 = vmatprep.subr.mxu0 0.0
    %1143 = vmatpush1.msra.mxu0 %v1039
    %1144 = vmatprep.subr.mxu0 0.0
    %1145 = vmatpush1.msra.mxu0 %v1040
    %1146 = vmatprep.subr.mxu0 0.0
    %1147 = vmatpush1.msra.mxu0 %v1041
    %1148 = vmatprep.subr.mxu0 0.0
    %1149 = vmatpush1.msra.mxu0 %v1042
    %1150 = vmatprep.subr.mxu0 0.0
    %1151 = vmatpush1.msra.mxu0 %v1043
    %1152 = vmatprep.subr.mxu0 0.0
    %1153 = vmatpush1.msra.mxu0 %v1044
    %1154 = vmatprep.subr.mxu0 0.0
    %1155 = vmatpush1.msra.mxu0 %v1045
    %1156 = vmatprep.subr.mxu0 0.0
    %1157 = vmatpush1.msra.mxu0 %v1046
    %1158 = vmatprep.subr.mxu0 0.0
    %1159 = vmatpush1.msra.mxu0 %v1047
    %1160 = vmatprep.subr.mxu0 0.0
    %1161 = vmatpush1.msra.mxu0 %v1048
    %1162 = vmatprep.subr.mxu0 0.0
    %1163 = vmatpush1.msra.mxu0 %v1049
    %1164 = vmatprep.subr.mxu0 0.0
    %1165 = vmatpush1.msra.mxu0 %v1050
    %1166 = vmatprep.subr.mxu0 0.0
    %1167 = vmatpush1.msra.mxu0 %v1051
    %1168 = vmatprep.subr.mxu0 0.0
    %1169 = vmatpush1.msra.mxu0 %v1052
    %1170 = vmatprep.subr.mxu0 0.0
    %1171 = vmatpush1.msra.mxu0 %v1053
    %1172 = vmatprep.subr.mxu0 0.0
    %1173 = vmatpush1.msra.mxu0 %v1054
    %1174 = vmatprep.subr.mxu0 0.0
    %1175 = vmatpush1.msra.mxu0 %v1055
    %1176 = vmatprep.subr.mxu0 0.0
    %1177 = vmatpush1.msra.mxu0 %v1056
    %1178 = vmatprep.mubr.f32.mxu0 %v1111
    %1179 = vmatmul.mubr.f32.gmra.mrb[0].mxu0 %v1110
    %v1180 = vpop.f32.mrb[0].mxu0
    %v1181 = vadd.f32 0.0, %v1180
    %v1182 = vpop.f32.mrb[0].mxu0
    %1183 = vdwg.mxu0
    %1184 = vmatprep.subr.mxu0 0.0
    %1185 = vmatpush1.msra.mxu0 %v1057
    %1186 = vmatprep.subr.mxu0 0.0
    %1187 = vmatpush1.msra.mxu0 %v1058
    %1188 = vmatprep.subr.mxu0 0.0
    %1189 = vmatpush1.msra.mxu0 %v1059
    %1190 = vmatprep.subr.mxu0 0.0
    %1191 = vmatpush1.msra.mxu0 %v1060
    %1192 = vmatprep.subr.mxu0 0.0
    %1193 = vmatpush1.msra.mxu0 %v1061
    %1194 = vmatprep.subr.mxu0 0.0
    %1195 = vmatpush1.msra.mxu0 %v1062
    %1196 = vmatprep.subr.mxu0 0.0
    %1197 = vmatpush1.msra.mxu0 %v1063
    %1198 = vmatprep.subr.mxu0 0.0
    %1199 = vmatpush1.msra.mxu0 %v1064
    %1200 = vmatprep.subr.mxu0 0.0
    %1201 = vmatpush1.msra.mxu0 %v1065
    %1202 = vmatprep.subr.mxu0 0.0
    %1203 = vmatpush1.msra.mxu0 %v1066
    %1204 = vmatprep.subr.mxu0 0.0
    %1205 = vmatpush1.msra.mxu0 %v1067
    %1206 = vmatprep.subr.mxu0 0.0
    %1207 = vmatpush1.msra.mxu0 %v1068
    %1208 = vmatprep.subr.mxu0 0.0
    %1209 = vmatpush1.msra.mxu0 %v1069
    %1210 = vmatprep.subr.mxu0 0.0
    %1211 = vmatpush1.msra.mxu0 %v1070
    %1212 = vmatprep.subr.mxu0 0.0
    %1213 = vmatpush1.msra.mxu0 %v1071
    %1214 = vmatprep.subr.mxu0 0.0
    %1215 = vmatpush1.msra.mxu0 %v1072
    %1216 = vmatprep.subr.mxu0 0.0
    %1217 = vmatpush1.msra.mxu0 %v1073
    %1218 = vmatprep.subr.mxu0 0.0
    %1219 = vmatpush1.msra.mxu0 %v1074
    %1220 = vmatprep.subr.mxu0 0.0
    %1221 = vmatpush1.msra.mxu0 %v1075
    %1222 = vmatprep.subr.mxu0 0.0
    %1223 = vmatpush1.msra.mxu0 %v1076
    %1224 = vmatprep.subr.mxu0 0.0
    %1225 = vmatpush1.msra.mxu0 %v1077
    %1226 = vmatprep.subr.mxu0 0.0
    %1227 = vmatpush1.msra.mxu0 %v1078
    %1228 = vmatprep.subr.mxu0 0.0
    %1229 = vmatpush1.msra.mxu0 %v1079
    %1230 = vmatprep.subr.mxu0 0.0
    %1231 = vmatpush1.msra.mxu0 %v1080
    %1232 = vmatprep.subr.mxu0 0.0
    %1233 = vmatpush1.msra.mxu0 %v1081
    %1234 = vmatprep.subr.mxu0 0.0
    %1235 = vmatpush1.msra.mxu0 %v1082
    %1236 = vmatprep.subr.mxu0 0.0
    %1237 = vmatpush1.msra.mxu0 %v1083
    %1238 = vmatprep.subr.mxu0 0.0
    %1239 = vmatpush1.msra.mxu0 %v1084
    %1240 = vmatprep.subr.mxu0 0.0
    %1241 = vmatpush1.msra.mxu0 %v1085
    %1242 = vmatprep.subr.mxu0 0.0
    %1243 = vmatpush1.msra.mxu0 %v1086
    %1244 = vmatprep.subr.mxu0 0.0
    %1245 = vmatpush1.msra.mxu0 %v1087
    %1246 = vmatprep.subr.mxu0 0.0
    %1247 = vmatpush1.msra.mxu0 %v1088
    %1248 = vmatprep.mubr.f32.mxu0 %v1113
    %1249 = vmatmul.mubr.f32.gmra.mrb[0].mxu0 %v1112
    %v1250 = vpop.f32.mrb[0].mxu0
    %v1251 = vadd.f32 %v1181, %v1250
    %v1252 = vpop.f32.mrb[0].mxu0
    %1253 = vdwg.mxu0
    %v1254 = vld [vmem:[%s3] sm:$0xff]
    %1256 = vset.pattern.permute.xlu0 0
    %1257 = vperm.xlu0 %1256, %v1254
    %v1258 = vpop.permute.xlu0 %1257
    %v1260 = vmul.f32 %v1251, %v1258
    %1261 = vst [vmem:[%s4] sm:$0xff] %v1260
  $region25: #{av_classifier_forward.4} parent=0 // pred_fallthru
    _
  // Predicated region
  $region26: #{av_classifier_forward.4} parent=0 // pred_check
    _
  $region27: #{av_classifier_forward.4} parent=0 // pred_check_branch
    %1263 = sbr.rel (0) target = $region29
  $region28: #{av_classifier_forward.4} parent=0 // pred_region
    _
  $region29: #{av_classifier_forward.4} parent=0 // pred_fallthru
    _
  // Predicated region
  $region30: #{av_classifier_forward.4} parent=0 // pred_check
    _
  $region31: #{av_classifier_forward.4} parent=0 // pred_check_branch
    %1265 = sbr.rel (0) target = $region33
  $region32: #{av_classifier_forward.4} parent=0 // pred_region
    _
  $region33: #{av_classifier_forward.4} parent=0 // pred_fallthru
    _

</llo_original>
